<compile_context>
chip_gen: v6e
topology: v6e:2x2x1
jax: 0.10.0
libtpu: 0.0.40
codegen_flags: <defaults>
</compile_context>

<pallas_src>
import jax
import jax.numpy as jnp
import numpy as np
from jax.experimental import pallas as pl
from jax.experimental.pallas import tpu as pltpu


def _bilinear_up2_matrix(L):
    """(L, 2L) matrix of PyTorch bilinear 2x upsample weights (align_corners=False)."""
    A = np.zeros((L, 2 * L), dtype=np.float32)
    for i in range(2 * L):
        src = (i + 0.5) / 2.0 - 0.5
        src = min(max(src, 0.0), float(L - 1))
        lo = int(np.floor(src))
        hi = min(lo + 1, L - 1)
        f = src - lo
        A[lo, i] += 1.0 - f
        A[hi, i] += f
    return jnp.asarray(A)


def skip_upsample_kernel(x_ref, w_ref, ah_ref, av_ref, y_ref, o_ref):
    # x_ref:  (1, H, Cin, W)    low-res input, H-major so pixels (W) sit on lanes
    # w_ref:  (TCo, Cin)        1x1 conv weight tile (out, in)
    # ah_ref: (W, 2W)           horizontal bilinear-2x matrix
    # av_ref: (2H, H)           vertical bilinear-2x matrix
    # y_ref:  (1, TCo, 2H, 2W)  skip connection (NCHW)
    # o_ref:  (1, TCo, 2H, 2W)  output (NCHW)
    _, H, Cin, W = x_ref.shape
    TCo = w_ref.shape[0]
    W2 = ah_ref.shape[1]
    H2 = av_ref.shape[0]

    x = x_ref[0]                                   # (H, Cin, W)
    w = w_ref[...]                                 # (TCo, Cin)
    ah = ah_ref[...]                               # (W, 2W), f32
    av = av_ref[...]                               # (2H, H), f32

    # (a) 1x1 conv at LOW resolution (commutes with the bilinear upsample),
    #     batched over H so pixels stay on the lane axis; f32 MXU accumulate.
    wb = jnp.broadcast_to(w[None], (H, TCo, Cin))
    t = jax.lax.dot_general(
        wb, x, (((2,), (1,)), ((0,), (0,))),
        preferred_element_type=jnp.float32)        # (H, TCo, W)

    # (b) move output channels to the leading dim once, on the SMALLEST
    #     intermediate; the lane dim (W) is untouched.
    tt = pltpu.einshape("hcw->chw", t)             # (TCo, H, W)

    # (c) horizontal 2x bilinear (interpolation + column interleave) as one
    #     batched MXU matmul -> no lane shuffles / masked partial stores.
    ahb = jnp.broadcast_to(ah[None], (TCo, W, W2))
    th = jax.lax.dot_general(
        tt, ahb, (((2,), (1,)), ((0,), (0,))),
        preferred_element_type=jnp.float32)        # (TCo, H, 2W)

    # (d) vertical 2x bilinear (interpolation + row interleave) as a second
    #     batched MXU matmul, producing the NCHW output block directly.
    avb = jnp.broadcast_to(av[None], (TCo, H2, H))
    v = jax.lax.dot_general(
        avb, th, (((2,), (1,)), ((0,), (0,))),
        preferred_element_type=jnp.float32)        # (TCo, 2H, 2W)

    # (e) skip-add and ONE lane/sublane-dense full-block store.
    o_ref[0] = (v + y_ref[0].astype(jnp.float32)).astype(o_ref.dtype)


def skip_upsample(x, y, weight, block_co=None,
                  vmem_limit_bytes=64 * 1024 * 1024):
    """SkipUpSample forward: conv1x1(bilinear_up2x(x)) + y, everything NCHW.

    x:      (N, Cin, H, W)     Cin = in_channels + s_factor (low resolution)
    y:      (N, Cout, 2H, 2W)  Cout = in_channels (skip connection)
    weight: (Cout, Cin)        1x1 conv weight, no bias
    """
    N, Cin, H, W = x.shape
    Cout = weight.shape[0]
    Ny, Cy, H2, W2 = y.shape
    assert Ny == N and Cy == Cout and H2 == 2 * H and W2 == 2 * W

    # Output-channel tile: full Cout when small, else a multiple-of-8 divisor,
    # so y/out blocks stay a few MB at real MPRNet sizes.
    if block_co is None:
        block_co = Cout if Cout <= 8 else next(
            (c for c in (32, 16, 8) if Cout % c == 0), Cout)
    assert Cout % block_co == 0
    n_co = Cout // block_co

    weight = weight.astype(x.dtype)

    # Only layout work in the wrapper: transpose the SMALL low-res x to
    # H-major (pixels on lanes).  y / output stay NCHW -> no extra HBM pass
    # over the big full-resolution tensors.
    xt = jnp.transpose(x, (0, 2, 1, 3))                      # (N, H, Cin, W)
    ah = _bilinear_up2_matrix(W)                             # (W, 2W)
    av = _bilinear_up2_matrix(H).T                           # (2H, H)

    out = pl.pallas_call(
        skip_upsample_kernel,
        out_shape=jax.ShapeDtypeStruct((N, Cout, H2, W2), y.dtype),
        grid_spec=pltpu.PrefetchScalarGridSpec(
            num_scalar_prefetch=0,
            grid=(N, n_co),
            in_specs=[
                pl.BlockSpec((1, H, Cin, W), lambda n, co: (n, 0, 0, 0)),
                pl.BlockSpec((block_co, Cin), lambda n, co: (co, 0)),
                pl.BlockSpec((W, W2), lambda n, co: (0, 0)),
                pl.BlockSpec((H2, H), lambda n, co: (0, 0)),
                pl.BlockSpec((1, block_co, H2, W2), lambda n, co: (n, co, 0, 0)),
            ],
            out_specs=pl.BlockSpec((1, block_co, H2, W2),
                                   lambda n, co: (n, co, 0, 0)),
        ),
        compiler_params=pltpu.CompilerParams(
            dimension_semantics=("parallel", "parallel"),
            vmem_limit_bytes=vmem_limit_bytes),
    )(xt, weight, ah, av, y)
    return out


def _bilinear_up2_ref(x):
    """Pure-JAX PyTorch Upsample(scale=2, bilinear, align_corners=False)."""
    N, C, H, W = x.shape

    def coords(L):
        src = (jnp.arange(2 * L, dtype=jnp.float32) + 0.5) / 2.0 - 0.5
        src = jnp.clip(src, 0.0, float(L - 1))
        lo = jnp.floor(src).astype(jnp.int32)
        hi = jnp.minimum(lo + 1, L - 1)
        return lo, hi, src - lo.astype(jnp.float32)

    lo_h, hi_h, fh = coords(H)
    lo_w, hi_w, fw = coords(W)
    fh = fh[None, None, :, None]
    xv = x[:, :, lo_h, :] * (1.0 - fh) + x[:, :, hi_h, :] * fh
    fw = fw[None, None, None, :]
    return xv[:, :, :, lo_w] * (1.0 - fw) + xv[:, :, :, hi_w] * fw


def _reference(x, y, weight):
    up = _bilinear_up2_ref(x)                                # (N, Cin, 2H, 2W)
    conv = jnp.einsum("oc,nchw->nohw", weight, up)           # 1x1 conv, no bias
    return conv + y


if __name__ == "__main__":
    key = jax.random.PRNGKey(0)
    k_x, k_y, k_w = jax.random.split(key, 3)

    # Small shapes consistent with SkipUpSample(in_channels=4, s_factor=4):
    # x is the low-res feature (in_channels + s_factor channels), y the skip.
    N, in_channels, s_factor = 2, 4, 4
    Cin = in_channels + s_factor
    Cout = in_channels
    H = W = 8                                    # output / skip is 16x16

    x = jax.random.normal(k_x, (N, Cin, H, W), dtype=jnp.float32)
    y = jax.random.normal(k_y, (N, Cout, 2 * H, 2 * W), dtype=jnp.float32)
    weight = jax.random.normal(k_w, (Cout, Cin), dtype=jnp.float32) * 0.1

    out = jax.block_until_ready(skip_upsample(x, y, weight))
    ref = _reference(x, y, weight)

    assert out.shape == (N, Cout, 2 * H, 2 * W), out.shape
    assert jnp.allclose(out, ref, atol=1e-4, rtol=1e-4), float(
        jnp.max(jnp.abs(out - ref)))

    print("KERNEL_OK")
</pallas_src>

<mosaic_0001>
module attributes {stable_mosaic.version = 11 : i64} {
  func.func @skip_upsample_kernel(%arg0: i32, %arg1: i32, %arg2: memref<1x8x8x8xf32, #tpu.memory_space<vmem>>, %arg3: memref<4x8xf32, #tpu.memory_space<vmem>>, %arg4: memref<8x16xf32, #tpu.memory_space<vmem>>, %arg5: memref<16x8xf32, #tpu.memory_space<vmem>>, %arg6: memref<1x4x16x16xf32, #tpu.memory_space<vmem>>, %arg7: memref<1x4x16x16xf32, #tpu.memory_space<vmem>>) attributes {dimension_semantics = [#tpu.dimension_semantics<parallel>, #tpu.dimension_semantics<parallel>], iteration_bounds = array<i64: 2, 1>, scalar_prefetch = 0 : i64, scratch_operands = 0 : i64, tpu.core_type = #tpu.core_type<tc>, window_params = [{transform_indices = @transform_0, window_bounds = array<i64: 1, 8, 8, 8>}, {transform_indices = @transform_1, window_bounds = array<i64: 4, 8>}, {pipeline_mode = #tpu.pipeline_mode<synchronous>, transform_indices = @transform_2, window_bounds = array<i64: 8, 16>}, {pipeline_mode = #tpu.pipeline_mode<synchronous>, transform_indices = @transform_3, window_bounds = array<i64: 16, 8>}, {transform_indices = @transform_4, window_bounds = array<i64: 1, 4, 16, 16>}, {transform_indices = @transform_5, window_bounds = array<i64: 1, 4, 16, 16>}]} {
    %c0 = arith.constant 0 : index
    %c0_0 = arith.constant 0 : index
    %c0_1 = arith.constant 0 : index
    %c0_2 = arith.constant 0 : index
    %0 = vector.load %arg2[%c0, %c0_0, %c0_1, %c0_2] : memref<1x8x8x8xf32, #tpu.memory_space<vmem>>, vector<1x8x8x8xf32>
    %1 = vector.shape_cast %0 : vector<1x8x8x8xf32> to vector<8x8x8xf32>
    %c0_3 = arith.constant 0 : index
    %c0_4 = arith.constant 0 : index
    %2 = vector.load %arg3[%c0_3, %c0_4] : memref<4x8xf32, #tpu.memory_space<vmem>>, vector<4x8xf32>
    %c0_5 = arith.constant 0 : index
    %c0_6 = arith.constant 0 : index
    %3 = vector.load %arg4[%c0_5, %c0_6] : memref<8x16xf32, #tpu.memory_space<vmem>>, vector<8x16xf32>
    %c0_7 = arith.constant 0 : index
    %c0_8 = arith.constant 0 : index
    %4 = vector.load %arg5[%c0_7, %c0_8] : memref<16x8xf32, #tpu.memory_space<vmem>>, vector<16x8xf32>
    %5 = vector.shape_cast %2 : vector<4x8xf32> to vector<1x4x8xf32>
    %6 = vector.shape_cast %5 : vector<1x4x8xf32> to vector<1x4x8xf32>
    %7 = vector.broadcast %6 : vector<1x4x8xf32> to vector<8x4x8xf32>
    %cst = arith.constant dense<0.000000e+00> : vector<8x4x8xf32>
    %8 = tpu.matmul %7, %1, %cst {dimension_numbers = #tpu.dot_dimension_numbers<[2], [1], [1], [2], [0, 0, 0, 1, 1, 2], [0], [0]>} : vector<8x4x8xf32>, vector<8x8x8xf32>, vector<8x4x8xf32> -> vector<8x4x8xf32>
    %9 = tpu.transpose %8, [1, 0, 2] : vector<8x4x8xf32> -> vector<4x8x8xf32>
    %10 = vector.shape_cast %3 : vector<8x16xf32> to vector<1x8x16xf32>
    %11 = vector.shape_cast %10 : vector<1x8x16xf32> to vector<1x8x16xf32>
    %12 = vector.broadcast %11 : vector<1x8x16xf32> to vector<4x8x16xf32>
    %cst_9 = arith.constant dense<0.000000e+00> : vector<4x8x16xf32>
    %13 = tpu.matmul %9, %12, %cst_9 {dimension_numbers = #tpu.dot_dimension_numbers<[2], [1], [1], [2], [0, 0, 0, 1, 1, 2], [0], [0]>} : vector<4x8x8xf32>, vector<4x8x16xf32>, vector<4x8x16xf32> -> vector<4x8x16xf32>
    %14 = vector.shape_cast %4 : vector<16x8xf32> to vector<1x16x8xf32>
    %15 = vector.shape_cast %14 : vector<1x16x8xf32> to vector<1x16x8xf32>
    %16 = vector.broadcast %15 : vector<1x16x8xf32> to vector<4x16x8xf32>
    %cst_10 = arith.constant dense<0.000000e+00> : vector<4x16x16xf32>
    %17 = tpu.matmul %16, %13, %cst_10 {dimension_numbers = #tpu.dot_dimension_numbers<[2], [1], [1], [2], [0, 0, 0, 1, 1, 2], [0], [0]>} : vector<4x16x8xf32>, vector<4x8x16xf32>, vector<4x16x16xf32> -> vector<4x16x16xf32>
    %c0_11 = arith.constant 0 : index
    %c0_12 = arith.constant 0 : index
    %c0_13 = arith.constant 0 : index
    %c0_14 = arith.constant 0 : index
    %18 = vector.load %arg6[%c0_11, %c0_12, %c0_13, %c0_14] : memref<1x4x16x16xf32, #tpu.memory_space<vmem>>, vector<1x4x16x16xf32>
    %19 = vector.shape_cast %18 : vector<1x4x16x16xf32> to vector<4x16x16xf32>
    %20 = arith.addf %17, %19 : vector<4x16x16xf32>
    %c0_15 = arith.constant 0 : index
    %c0_16 = arith.constant 0 : index
    %c0_17 = arith.constant 0 : index
    %c0_18 = arith.constant 0 : index
    %21 = vector.load %arg7[%c0_15, %c0_16, %c0_17, %c0_18] : memref<1x4x16x16xf32, #tpu.memory_space<vmem>>, vector<1x4x16x16xf32>
    %22 = vector.shape_cast %21 : vector<1x4x16x16xf32> to vector<4x16x16xf32>
    %23 = vector.shape_cast %20 : vector<4x16x16xf32> to vector<1x4x16x16xf32>
    tpu.vector_store %arg7[%c0_15, %c0_16, %c0_17, %c0_18], %23 {strides = array<i32>} : memref<1x4x16x16xf32, #tpu.memory_space<vmem>>, vector<1x4x16x16xf32>,
    return
  }
  func.func @transform_0(%arg0: i32, %arg1: i32) -> (i32, i32, i32, i32) {
    %c0_i32 = arith.constant 0 : i32
    %c0_i32_0 = arith.constant 0 : i32
    %c0_i32_1 = arith.constant 0 : i32
    %c0_i32_2 = arith.constant 0 : i32
    return %arg0, %c0_i32, %c0_i32_0, %c0_i32_1 : i32, i32, i32, i32
  }
  func.func @transform_1(%arg0: i32, %arg1: i32) -> (i32, i32) {
    %c0_i32 = arith.constant 0 : i32
    %c0_i32_0 = arith.constant 0 : i32
    return %arg1, %c0_i32 : i32, i32
  }
  func.func @transform_2(%arg0: i32, %arg1: i32) -> (i32, i32) {
    %c0_i32 = arith.constant 0 : i32
    %c0_i32_0 = arith.constant 0 : i32
    %c0_i32_1 = arith.constant 0 : i32
    return %c0_i32, %c0_i32_0 : i32, i32
  }
  func.func @transform_3(%arg0: i32, %arg1: i32) -> (i32, i32) {
    %c0_i32 = arith.constant 0 : i32
    %c0_i32_0 = arith.constant 0 : i32
    %c0_i32_1 = arith.constant 0 : i32
    return %c0_i32, %c0_i32_0 : i32, i32
  }
  func.func @transform_4(%arg0: i32, %arg1: i32) -> (i32, i32, i32, i32) {
    %c0_i32 = arith.constant 0 : i32
    %c0_i32_0 = arith.constant 0 : i32
    %c0_i32_1 = arith.constant 0 : i32
    return %arg0, %arg1, %c0_i32, %c0_i32_0 : i32, i32, i32, i32
  }
  func.func @transform_5(%arg0: i32, %arg1: i32) -> (i32, i32, i32, i32) {
    %c0_i32 = arith.constant 0 : i32
    %c0_i32_0 = arith.constant 0 : i32
    %c0_i32_1 = arith.constant 0 : i32
    return %arg0, %arg1, %c0_i32, %c0_i32_0 : i32, i32, i32, i32
  }
}

</mosaic_0001>

<llo_original>
// kernel: tpu_custom_call.1
$region0: #{tpu_custom_call.1}
  #allocation0 [shape = 'u32[]', space=smem, size = 0x4, offset = 0x4, fixed_abs, tag = 'smem constant byte address 0x4 - core index']
  #allocation1 [shape = 'u32[144,128]{1,0:T(1,128)}', space=vmem, size = 0x12000, scoped, tag = 'internal scratch']
  %s0 = inlined_call_operand.hbm [shape: f32[2,8,8,8], index: 0, kind: input, shape index: {}]
  %s1 = inlined_call_operand.vmem [shape: f32[4,8], index: 1, kind: input, shape index: {}]
  %s2 = inlined_call_operand.vmem [shape: f32[8,16], index: 2, kind: input, shape index: {}]
  %s3 = inlined_call_operand.vmem [shape: f32[16,8], index: 3, kind: input, shape index: {}]
  %s4 = inlined_call_operand.hbm [shape: f32[2,4,16,16], index: 4, kind: input, shape index: {}]
  %s5 = inlined_call_operand.hbm [shape: f32[2,4,16,16], index: 5, kind: output, shape index: {}]
  %s6 = sld [smem:[#allocation0]]
  $region61: #{tpu_custom_call.1} parent=0
    _
  %s8 = ssub.s32 1, %s6
  %s9 = scalar_select 0, %s8, %s6
  $region1: #{tpu_custom_call.1} parent=0
    #allocation2 [shape = 'u8[65536]{0}', space=vmem, size = 0x10000, scoped, tag = 'input window, operand 0']
    #allocation3 [shape = 's32[2]{0}', space=sflag, size = 0x8, scoped, tag = 'scoped memory for tpu_custom_call.1']
    #allocation4 [shape = 's32[2]{0}', space=sflag, size = 0x8, scoped, tag = 'scoped memory for tpu_custom_call.1']
    #allocation5 [shape = 'u8[65536]{0}', space=vmem, size = 0x10000, scoped, tag = 'input window, operand 4']
    #allocation6 [shape = 's32[2]{0}', space=sflag, size = 0x8, scoped, tag = 'scoped memory for tpu_custom_call.1']
    #allocation7 [shape = 'u8[65536]{0}', space=vmem, size = 0x10000, scoped, tag = 'output window, operand 0']
    %10 = vsyncpa [#allocation3], 0
    %s11 = scalar_lea.sflag [#allocation3], 1
    %12 = vsyncpa %s11, 0
    %13 = vsyncpa [#allocation6], 0
    %s14 = scalar_lea.sflag [#allocation6], 1
    %15 = vsyncpa %s14, 0
    %16 = vsyncpa [#allocation4], 0
    %s17 = scalar_lea.sflag [#allocation4], 1
    %18 = vsyncpa %s17, 0
    loop: start=0, step=1, limit=4
    $region2: #{tpu_custom_call.1} parent=1 // loop_pre_header
      _
    $region3: #{tpu_custom_call.1} parent=1 // loop_header
      %s20 = sphi 0, %s24
      %p21 = scmp.ge.s32.totalorder %s20, 4
      %s27 = sphi 0, %s39
      %s28 = sphi 0, %s35
      %s29 = sphi 0, %s27
      %s30 = sphi 0, %s28
      %s31 = sphi 0, %s29
      %s32 = sphi 0, %s30
      %s42 = sphi 0, %s44
      %s45 = sphi 0, %s42
      %s46 = sphi 0, %s45
      %s62 = sphi 0, %s46
      %s68 = sphi 0, %s70
      %s71 = sphi 0, %s68
      %s72 = sphi 0, %s71
      %s88 = sphi 0, %s72
      %s92 = sphi 0, %s92
      %s94 = sphi 0, %s92
      %s95 = sphi 0, %s94
      %s109 = sphi 0, %s95
      %s113 = sphi 0, %s113
      %s115 = sphi 0, %s113
      %s116 = sphi 0, %s115
      %s130 = sphi 0, %s116
      %s138 = sphi 0, %s140
      %s141 = sphi 0, %s138
      %s142 = sphi 0, %s141
      %s158 = sphi 0, %s142
      %s166 = sphi 0, %s168
      %s169 = sphi 0, %s166
      %s170 = sphi 0, %s169
      %s186 = sphi 0, %s170
    $region4: #{tpu_custom_call.1} parent=1 // loop_header_branch
      %23 = sbr.rel (%p21) target = $region8
    $region5: #{tpu_custom_call.1} parent=1 // loop_body
      %s25 = ssub.s32 %s20, 1
      %s26 = ssub.s32 %s20, 2
      %s33 = sadd.s32 1, %s28
      %p34 = scmp.ge.s32.totalorder %s33, 1
      %s35 = scalar_select %p34, 0, %s33
      %s36 = sadd.s32 1, %s27
      %s37 = scalar_select %p34, %s36, %s27
      %p38 = scmp.ge.s32.totalorder %s37, 2
      %s39 = scalar_select %p38, 0, %s37
      %s40 = ssub.s32 %s27, %s39
      %p41 = scmp.eq.s32.totalorder %s40, 0
      %s43 = sadd.s32 %s42, 1
      %s44 = scalar_select %p41, %s42, %s43
      %p47 = pneg %p41
      %p48 = scmp.eq.s32.totalorder %s20, 1
      %p49 = por %p47, %p48
      %p50 = scmp.ne.s32.totalorder %s42, %s45
      %p51 = scmp.eq.s32.totalorder %s20, 0
      %p52 = por %p50, %p51
      %p53 = scmp.ne.s32.totalorder %s42, %s45
      %p54 = scmp.eq.s32.totalorder %s25, 1
      %p55 = por %p53, %p54
      %p56 = scmp.ne.s32.totalorder %s45, %s46
      %p57 = scmp.eq.s32.totalorder %s25, 0
      %p58 = por %p56, %p57
      %p59 = scmp.ne.s32.totalorder %s45, %s46
      %p60 = scmp.eq.s32.totalorder %s26, 1
      %p61 = por %p59, %p60
      %p63 = scmp.ne.s32.totalorder %s46, %s62
      %p64 = scmp.eq.s32.totalorder %s26, 0
      %p65 = por %p63, %p64
      %s66 = ssub.s32 %s28, %s35
      %p67 = scmp.eq.s32.totalorder %s66, 0
      %s69 = sadd.s32 %s68, 1
      %s70 = scalar_select %p67, %s68, %s69
      %p73 = pneg %p67
      %p74 = scmp.eq.s32.totalorder %s20, 1
      %p75 = por %p73, %p74
      %p76 = scmp.ne.s32.totalorder %s68, %s71
      %p77 = scmp.eq.s32.totalorder %s20, 0
      %p78 = por %p76, %p77
      %p79 = scmp.ne.s32.totalorder %s68, %s71
      %p80 = scmp.eq.s32.totalorder %s25, 1
      %p81 = por %p79, %p80
      %p82 = scmp.ne.s32.totalorder %s71, %s72
      %p83 = scmp.eq.s32.totalorder %s25, 0
      %p84 = por %p82, %p83
      %p85 = scmp.ne.s32.totalorder %s71, %s72
      %p86 = scmp.eq.s32.totalorder %s26, 1
      %p87 = por %p85, %p86
      %p89 = scmp.ne.s32.totalorder %s72, %s88
      %p90 = scmp.eq.s32.totalorder %s26, 0
      %p91 = por %p89, %p90
      %s93 = sadd.s32 %s92, 1
      %p96 = scmp.eq.s32.totalorder %s20, 1
      %p97 = scmp.ne.s32.totalorder %s92, %s94
      %p98 = scmp.eq.s32.totalorder %s20, 0
      %p99 = por %p97, %p98
      %p100 = scmp.ne.s32.totalorder %s92, %s94
      %p101 = scmp.eq.s32.totalorder %s25, 1
      %p102 = por %p100, %p101
      %p103 = scmp.ne.s32.totalorder %s94, %s95
      %p104 = scmp.eq.s32.totalorder %s25, 0
      %p105 = por %p103, %p104
      %p106 = scmp.ne.s32.totalorder %s94, %s95
      %p107 = scmp.eq.s32.totalorder %s26, 1
      %p108 = por %p106, %p107
      %p110 = scmp.ne.s32.totalorder %s95, %s109
      %p111 = scmp.eq.s32.totalorder %s26, 0
      %p112 = por %p110, %p111
      %s114 = sadd.s32 %s113, 1
      %p117 = scmp.eq.s32.totalorder %s20, 1
      %p118 = scmp.ne.s32.totalorder %s113, %s115
      %p119 = scmp.eq.s32.totalorder %s20, 0
      %p120 = por %p118, %p119
      %p121 = scmp.ne.s32.totalorder %s113, %s115
      %p122 = scmp.eq.s32.totalorder %s25, 1
      %p123 = por %p121, %p122
      %p124 = scmp.ne.s32.totalorder %s115, %s116
      %p125 = scmp.eq.s32.totalorder %s25, 0
      %p126 = por %p124, %p125
      %p127 = scmp.ne.s32.totalorder %s115, %s116
      %p128 = scmp.eq.s32.totalorder %s26, 1
      %p129 = por %p127, %p128
      %p131 = scmp.ne.s32.totalorder %s116, %s130
      %p132 = scmp.eq.s32.totalorder %s26, 0
      %p133 = por %p131, %p132
      %s134 = ssub.s32 %s27, %s39
      %s135 = ssub.s32 %s28, %s35
      %s136 = sor.u32 %s134, %s135
      %p137 = scmp.eq.s32.totalorder %s136, 0
      %s139 = sadd.s32 %s138, 1
      %s140 = scalar_select %p137, %s138, %s139
      %p143 = pneg %p137
      %p144 = scmp.eq.s32.totalorder %s20, 1
      %p145 = por %p143, %p144
      %p146 = scmp.ne.s32.totalorder %s138, %s141
      %p147 = scmp.eq.s32.totalorder %s20, 0
      %p148 = por %p146, %p147
      %p149 = scmp.ne.s32.totalorder %s138, %s141
      %p150 = scmp.eq.s32.totalorder %s25, 1
      %p151 = por %p149, %p150
      %p152 = scmp.ne.s32.totalorder %s141, %s142
      %p153 = scmp.eq.s32.totalorder %s25, 0
      %p154 = por %p152, %p153
      %p155 = scmp.ne.s32.totalorder %s141, %s142
      %p156 = scmp.eq.s32.totalorder %s26, 1
      %p157 = por %p155, %p156
      %p159 = scmp.ne.s32.totalorder %s142, %s158
      %p160 = scmp.eq.s32.totalorder %s26, 0
      %p161 = por %p159, %p160
      %s162 = ssub.s32 %s27, %s39
      %s163 = ssub.s32 %s28, %s35
      %s164 = sor.u32 %s162, %s163
      %p165 = scmp.eq.s32.totalorder %s164, 0
      %s167 = sadd.s32 %s166, 1
      %s168 = scalar_select %p165, %s166, %s167
      %p171 = pneg %p165
      %p172 = scmp.eq.s32.totalorder %s20, 1
      %p173 = por %p171, %p172
      %p174 = scmp.ne.s32.totalorder %s166, %s169
      %p175 = scmp.eq.s32.totalorder %s20, 0
      %p176 = por %p174, %p175
      %p177 = scmp.ne.s32.totalorder %s166, %s169
      %p178 = scmp.eq.s32.totalorder %s25, 1
      %p179 = por %p177, %p178
      %p180 = scmp.ne.s32.totalorder %s169, %s170
      %p181 = scmp.eq.s32.totalorder %s25, 0
      %p182 = por %p180, %p181
      %p183 = scmp.ne.s32.totalorder %s169, %s170
      %p184 = scmp.eq.s32.totalorder %s26, 1
      %p185 = por %p183, %p184
      %p187 = scmp.ne.s32.totalorder %s170, %s186
      %p188 = scmp.eq.s32.totalorder %s26, 0
      %p189 = por %p187, %p188
      %p190 = scmp.le.s32.totalorder 1, %s20
      %p191 = scmp.lt.s32.totalorder %s20, 3
      %p192 = pnand %p190, %p191
      %p193 = pneg %p192
      // Predicated region
      $region9: #{tpu_custom_call.1} parent=5 // pred_check
        _
      $region10: #{tpu_custom_call.1} parent=5 // pred_check_branch
        %195 = sbr.rel (%p192) target = $region12
      $region11: #{tpu_custom_call.1} parent=5 // pred_region
        %s196 = ssub.s32 %s20, 1
        // Predicated region
        $region13: #{tpu_custom_call.1} parent=11 // pred_check
          %p197 = pneg %p84
        $region14: #{tpu_custom_call.1} parent=11 // pred_check_branch
          %199 = sbr.rel (%p197) target = $region16
        $region15: #{tpu_custom_call.1} parent=11 // pred_region
          %p200 = scmp.lt.s32.totalorder %s30, 0
          %s201 = scalar_select %p200, %s30, 0
          %s202 = smul.addr %s201, 4
          %s203 = scalar_lea.vmem %s1, %s202
        $region16: #{tpu_custom_call.1} parent=11 // pred_fallthru
          _
        // Predicated region
        $region17: #{tpu_custom_call.1} parent=11 // pred_check
          %p204 = pneg %p105
        $region18: #{tpu_custom_call.1} parent=11 // pred_check_branch
          %206 = sbr.rel (%p204) target = $region20
        $region19: #{tpu_custom_call.1} parent=11 // pred_region
          _
        $region20: #{tpu_custom_call.1} parent=11 // pred_fallthru
          _
        // Predicated region
        $region21: #{tpu_custom_call.1} parent=11 // pred_check
          %p207 = pneg %p126
        $region22: #{tpu_custom_call.1} parent=11 // pred_check_branch
          %209 = sbr.rel (%p207) target = $region24
        $region23: #{tpu_custom_call.1} parent=11 // pred_region
          _
        $region24: #{tpu_custom_call.1} parent=11 // pred_fallthru
          _
      $region12: #{tpu_custom_call.1} parent=5 // pred_fallthru
        _
      %p210 = scmp.lt.s32.totalorder %s20, 2
      // Predicated region
      $region25: #{tpu_custom_call.1} parent=5 // pred_check
        %p211 = pneg %p210
      $region26: #{tpu_custom_call.1} parent=5 // pred_check_branch
        %213 = sbr.rel (%p211) target = $region28
      $region27: #{tpu_custom_call.1} parent=5 // pred_region
        // Predicated region
        $region29: #{tpu_custom_call.1} parent=27 // pred_check
          %p214 = pneg %p52
        $region30: #{tpu_custom_call.1} parent=27 // pred_check_branch
          %216 = sbr.rel (%p214) target = $region32
        $region31: #{tpu_custom_call.1} parent=27 // pred_region
          %s217 = sand.u32 %s42, 1
          %s218 = scalar_lea.sflag [#allocation3], %s217
          %s219 = sand.u32 %s42, 1
          %s220 = smul.addr %s219, 64
          %s221 = scalar_lea.vmem [#allocation2], %s220
          %s223 = ssub.s32 1024, 1024
          %224 = vsyncadd %s218, %s223
          %s225 = smul.addr %s27, 8
          %s226 = smul.addr %s225, 128
          %s227 = scalar_lea.hbm %s0, %s226
          %s228 = sshll.u32 %s221, 4
          %s229 = int_to_ptr.vmem [resolvable:$true] %s228
          %234 = dma.hbm_to_vmem [thread:$0]  %s227, 1024, %s229, %s218, 128, 128, 8
        $region32: #{tpu_custom_call.1} parent=27 // pred_fallthru
          _
        // Predicated region
        $region33: #{tpu_custom_call.1} parent=27 // pred_check
          %p235 = pneg %p148
        $region34: #{tpu_custom_call.1} parent=27 // pred_check_branch
          %237 = sbr.rel (%p235) target = $region36
        $region35: #{tpu_custom_call.1} parent=27 // pred_region
          %s238 = sand.u32 %s138, 1
          %s239 = scalar_lea.sflag [#allocation6], %s238
          %s240 = sand.u32 %s138, 1
          %s241 = smul.addr %s240, 64
          %s242 = scalar_lea.vmem [#allocation5], %s241
          %s243 = smul.u32 4, %s28
          %s245 = ssub.s32 1024, 1024
          %246 = vsyncadd %s239, %s245
          %s247 = smul.addr %s243, 2
          %s248 = smul.addr %s27, 8
          %s249 = sadd.s32 %s247, %s248
          %s250 = smul.addr %s249, 128
          %s251 = scalar_lea.hbm %s4, %s250
          %s252 = sshll.u32 %s242, 4
          %s253 = int_to_ptr.vmem [resolvable:$true] %s252
          %258 = dma.hbm_to_vmem [thread:$0]  %s251, 1024, %s253, %s239, 128, 128, 8
        $region36: #{tpu_custom_call.1} parent=27 // pred_fallthru
          _
      $region28: #{tpu_custom_call.1} parent=5 // pred_fallthru
        _
      %p259 = scmp.le.s32.totalorder 1, %s20
      %p260 = scmp.lt.s32.totalorder %s20, 3
      %p261 = pnand %p259, %p260
      %p262 = pneg %p261
      // Predicated region
      $region37: #{tpu_custom_call.1} parent=5 // pred_check
        _
      $region38: #{tpu_custom_call.1} parent=5 // pred_check_branch
        %264 = sbr.rel (%p261) target = $region40
      $region39: #{tpu_custom_call.1} parent=5 // pred_region
        %s265 = ssub.s32 %s20, 1
        %s266 = sand.u32 %s45, 1
        %s267 = scalar_lea.sflag [#allocation3], %s266
        %s268 = sand.u32 %s45, 1
        %s269 = smul.addr %s268, 64
        %s270 = scalar_lea.vmem [#allocation2], %s269
        // Predicated region
        $region41: #{tpu_custom_call.1} parent=39 // pred_check
          %p271 = pneg %p58
        $region42: #{tpu_custom_call.1} parent=39 // pred_check_branch
          %273 = sbr.rel (%p271) target = $region44
        $region43: #{tpu_custom_call.1} parent=39 // pred_region
          %274 = dma.done %s267, 1024
        $region44: #{tpu_custom_call.1} parent=39 // pred_fallthru
          _
        %s275 = sand.u32 %s141, 1
        %s276 = scalar_lea.sflag [#allocation6], %s275
        %s277 = sand.u32 %s141, 1
        %s278 = smul.addr %s277, 64
        %s279 = scalar_lea.vmem [#allocation5], %s278
        // Predicated region
        $region45: #{tpu_custom_call.1} parent=39 // pred_check
          %p280 = pneg %p154
        $region46: #{tpu_custom_call.1} parent=39 // pred_check_branch
          %282 = sbr.rel (%p280) target = $region48
        $region47: #{tpu_custom_call.1} parent=39 // pred_region
          %283 = dma.done %s276, 1024
        $region48: #{tpu_custom_call.1} parent=39 // pred_fallthru
          _
        %s284 = sand.u32 %s45, 1
        %s285 = scalar_lea.sflag [#allocation3], %s284
        %s286 = sand.u32 %s45, 1
        %s287 = smul.addr %s286, 64
        %s288 = scalar_lea.vmem [#allocation2], %s287
        %p289 = pneg %p58
        %p290 = pneg %p55
        %p291 = scmp.lt.s32.totalorder %s30, 0
        %s292 = scalar_select %p291, %s30, 0
        %s293 = smul.addr %s292, 4
        %s294 = scalar_lea.vmem %s1, %s293
        %p295 = pneg %p84
        %p296 = pneg %p81
        %p297 = pneg %p105
        %p298 = pneg %p102
        %p299 = pneg %p126
        %p300 = pneg %p123
        %s301 = sand.u32 %s141, 1
        %s302 = scalar_lea.sflag [#allocation6], %s301
        %s303 = sand.u32 %s141, 1
        %s304 = smul.addr %s303, 64
        %s305 = scalar_lea.vmem [#allocation5], %s304
        %p306 = pneg %p154
        %p307 = pneg %p151
        %p308 = pneg %p182
        %p309 = pneg %p179
        %s310 = sand.u32 %s169, 1
        %s311 = scalar_lea.sflag [#allocation4], %s310
        %s312 = sand.u32 %s169, 1
        %s313 = smul.addr %s312, 64
        %s314 = scalar_lea.vmem [#allocation7], %s313
        %p315 = scmp.lt.s32.totalorder %s30, 0
        %s316 = scalar_select %p315, %s30, 0
        %s317 = smul.addr %s316, 4
        %s318 = scalar_lea.vmem %s1, %s317
        %s319 = smul.u32 4, %s30
        %s320 = smul.u32 4, %s30
        %v321 = vld [vmem:[%s270] sm:$0xff]
        %v322 = vld [vmem:[%s270 + $0x8] sm:$0xff]
        %v323 = vld [vmem:[%s270 + $0x10] sm:$0xff]
        %v324 = vld [vmem:[%s270 + $0x18] sm:$0xff]
        %v325 = vld [vmem:[%s270 + $0x20] sm:$0xff]
        %v326 = vld [vmem:[%s270 + $0x28] sm:$0xff]
        %v327 = vld [vmem:[%s270 + $0x30] sm:$0xff]
        %v328 = vld [vmem:[%s270 + $0x38] sm:$0xff]
        %v329 = vld [vmem:[%s318] sm:$0xf]
        %v330 = vld [vmem:[%s2] sm:$0xff]
        %v331 = vld [vmem:[%s3] sm:$0xff]
        %v332 = vld [vmem:[%s3 + $0x8] sm:$0xff]
        %vm333 = vcmask 64512
        %v335 = vsel %vm333, %v329, 0
        %337 = vmatprep.subr.mxu0 0.0
        %338 = vmatpush1.msra.mxu0 0.0
        %339 = vmatprep.subr.mxu0 0.0
        %340 = vmatpush1.msra.mxu0 0.0
        %341 = vmatprep.subr.mxu0 0.0
        %342 = vmatpush1.msra.mxu0 0.0
        %343 = vmatprep.subr.mxu0 0.0
        %344 = vmatpush1.msra.mxu0 0.0
        %345 = vmatprep.subr.mxu0 0.0
        %346 = vmatpush1.msra.mxu0 0.0
        %347 = vmatprep.subr.mxu0 0.0
        %348 = vmatpush1.msra.mxu0 0.0
        %349 = vmatprep.subr.mxu0 0.0
        %350 = vmatpush1.msra.mxu0 0.0
        %351 = vmatprep.subr.mxu0 0.0
        %352 = vmatpush1.msra.mxu0 0.0
        %353 = vmatprep.subr.mxu0 0.0
        %354 = vmatpush1.msra.mxu0 0.0
        %355 = vmatprep.subr.mxu0 0.0
        %356 = vmatpush1.msra.mxu0 0.0
        %357 = vmatprep.subr.mxu0 0.0
        %358 = vmatpush1.msra.mxu0 0.0
        %359 = vmatprep.subr.mxu0 0.0
        %360 = vmatpush1.msra.mxu0 0.0
        %361 = vmatprep.subr.mxu0 0.0
        %362 = vmatpush1.msra.mxu0 0.0
        %363 = vmatprep.subr.mxu0 0.0
        %364 = vmatpush1.msra.mxu0 0.0
        %365 = vmatprep.subr.mxu0 0.0
        %366 = vmatpush1.msra.mxu0 0.0
        %367 = vmatprep.subr.mxu0 0.0
        %368 = vmatpush1.msra.mxu0 %v321
        %369 = vmatprep.subr.mxu0 0.0
        %370 = vmatpush2.msra.mxu0 0.0
        %371 = vmatprep.subr.mxu0 0.0
        %372 = vmatpush2.msra.mxu0 0.0
        %373 = vmatprep.subr.mxu0 0.0
        %374 = vmatpush2.msra.mxu0 0.0
        %375 = vmatprep.subr.mxu0 0.0
        %376 = vmatpush2.msra.mxu0 0.0
        %377 = vmatprep.subr.mxu0 0.0
        %378 = vmatpush2.msra.mxu0 0.0
        %379 = vmatprep.subr.mxu0 0.0
        %380 = vmatpush2.msra.mxu0 0.0
        %381 = vmatprep.subr.mxu0 0.0
        %382 = vmatpush2.msra.mxu0 0.0
        %383 = vmatprep.subr.mxu0 0.0
        %384 = vmatpush2.msra.mxu0 0.0
        %385 = vmatprep.subr.mxu0 0.0
        %386 = vmatpush2.msra.mxu0 0.0
        %387 = vmatprep.subr.mxu0 0.0
        %388 = vmatpush2.msra.mxu0 0.0
        %389 = vmatprep.subr.mxu0 0.0
        %390 = vmatpush2.msra.mxu0 0.0
        %391 = vmatprep.subr.mxu0 0.0
        %392 = vmatpush2.msra.mxu0 0.0
        %393 = vmatprep.subr.mxu0 0.0
        %394 = vmatpush2.msra.mxu0 0.0
        %395 = vmatprep.subr.mxu0 0.0
        %396 = vmatpush2.msra.mxu0 0.0
        %397 = vmatprep.subr.mxu0 0.0
        %398 = vmatpush2.msra.mxu0 0.0
        %399 = vmatprep.subr.mxu0 0.0
        %400 = vmatpush2.msra.mxu0 0.0
        %401 = vmatprep.mubr.f32.mxu0 0.0
        %402 = vmatmul.mubr.f32.gmra.mxu0 %v335
        %v403 = vpop.f32.mrf.mxu0
        %v404 = vadd.f32 0.0, %v403
        %v405 = vpop.f32.mrf.mxu0
        %406 = vdwg.mxu0
        %407 = vmatprep.subr.mxu0 0.0
        %408 = vmatpush1.msra.mxu0 0.0
        %409 = vmatprep.subr.mxu0 0.0
        %410 = vmatpush1.msra.mxu0 0.0
        %411 = vmatprep.subr.mxu0 0.0
        %412 = vmatpush1.msra.mxu0 0.0
        %413 = vmatprep.subr.mxu0 0.0
        %414 = vmatpush1.msra.mxu0 0.0
        %415 = vmatprep.subr.mxu0 0.0
        %416 = vmatpush1.msra.mxu0 0.0
        %417 = vmatprep.subr.mxu0 0.0
        %418 = vmatpush1.msra.mxu0 0.0
        %419 = vmatprep.subr.mxu0 0.0
        %420 = vmatpush1.msra.mxu0 0.0
        %421 = vmatprep.subr.mxu0 0.0
        %422 = vmatpush1.msra.mxu0 0.0
        %423 = vmatprep.subr.mxu0 0.0
        %424 = vmatpush1.msra.mxu0 0.0
        %425 = vmatprep.subr.mxu0 0.0
        %426 = vmatpush1.msra.mxu0 0.0
        %427 = vmatprep.subr.mxu0 0.0
        %428 = vmatpush1.msra.mxu0 0.0
        %429 = vmatprep.subr.mxu0 0.0
        %430 = vmatpush1.msra.mxu0 0.0
        %431 = vmatprep.subr.mxu0 0.0
        %432 = vmatpush1.msra.mxu0 0.0
        %433 = vmatprep.subr.mxu0 0.0
        %434 = vmatpush1.msra.mxu0 0.0
        %435 = vmatprep.subr.mxu0 0.0
        %436 = vmatpush1.msra.mxu0 0.0
        %437 = vmatprep.subr.mxu0 0.0
        %438 = vmatpush1.msra.mxu0 %v322
        %439 = vmatprep.subr.mxu0 0.0
        %440 = vmatpush2.msra.mxu0 0.0
        %441 = vmatprep.subr.mxu0 0.0
        %442 = vmatpush2.msra.mxu0 0.0
        %443 = vmatprep.subr.mxu0 0.0
        %444 = vmatpush2.msra.mxu0 0.0
        %445 = vmatprep.subr.mxu0 0.0
        %446 = vmatpush2.msra.mxu0 0.0
        %447 = vmatprep.subr.mxu0 0.0
        %448 = vmatpush2.msra.mxu0 0.0
        %449 = vmatprep.subr.mxu0 0.0
        %450 = vmatpush2.msra.mxu0 0.0
        %451 = vmatprep.subr.mxu0 0.0
        %452 = vmatpush2.msra.mxu0 0.0
        %453 = vmatprep.subr.mxu0 0.0
        %454 = vmatpush2.msra.mxu0 0.0
        %455 = vmatprep.subr.mxu0 0.0
        %456 = vmatpush2.msra.mxu0 0.0
        %457 = vmatprep.subr.mxu0 0.0
        %458 = vmatpush2.msra.mxu0 0.0
        %459 = vmatprep.subr.mxu0 0.0
        %460 = vmatpush2.msra.mxu0 0.0
        %461 = vmatprep.subr.mxu0 0.0
        %462 = vmatpush2.msra.mxu0 0.0
        %463 = vmatprep.subr.mxu0 0.0
        %464 = vmatpush2.msra.mxu0 0.0
        %465 = vmatprep.subr.mxu0 0.0
        %466 = vmatpush2.msra.mxu0 0.0
        %467 = vmatprep.subr.mxu0 0.0
        %468 = vmatpush2.msra.mxu0 0.0
        %469 = vmatprep.subr.mxu0 0.0
        %470 = vmatpush2.msra.mxu0 0.0
        %471 = vmatprep.mubr.f32.mxu0 0.0
        %472 = vmatmul.mubr.f32.gmra.mxu0 %v335
        %v473 = vpop.f32.mrf.mxu0
        %v474 = vadd.f32 0.0, %v473
        %v475 = vpop.f32.mrf.mxu0
        %476 = vdwg.mxu0
        %477 = vmatprep.subr.mxu0 0.0
        %478 = vmatpush1.msra.mxu0 0.0
        %479 = vmatprep.subr.mxu0 0.0
        %480 = vmatpush1.msra.mxu0 0.0
        %481 = vmatprep.subr.mxu0 0.0
        %482 = vmatpush1.msra.mxu0 0.0
        %483 = vmatprep.subr.mxu0 0.0
        %484 = vmatpush1.msra.mxu0 0.0
        %485 = vmatprep.subr.mxu0 0.0
        %486 = vmatpush1.msra.mxu0 0.0
        %487 = vmatprep.subr.mxu0 0.0
        %488 = vmatpush1.msra.mxu0 0.0
        %489 = vmatprep.subr.mxu0 0.0
        %490 = vmatpush1.msra.mxu0 0.0
        %491 = vmatprep.subr.mxu0 0.0
        %492 = vmatpush1.msra.mxu0 0.0
        %493 = vmatprep.subr.mxu0 0.0
        %494 = vmatpush1.msra.mxu0 0.0
        %495 = vmatprep.subr.mxu0 0.0
        %496 = vmatpush1.msra.mxu0 0.0
        %497 = vmatprep.subr.mxu0 0.0
        %498 = vmatpush1.msra.mxu0 0.0
        %499 = vmatprep.subr.mxu0 0.0
        %500 = vmatpush1.msra.mxu0 0.0
        %501 = vmatprep.subr.mxu0 0.0
        %502 = vmatpush1.msra.mxu0 0.0
        %503 = vmatprep.subr.mxu0 0.0
        %504 = vmatpush1.msra.mxu0 0.0
        %505 = vmatprep.subr.mxu0 0.0
        %506 = vmatpush1.msra.mxu0 0.0
        %507 = vmatprep.subr.mxu0 0.0
        %508 = vmatpush1.msra.mxu0 %v323
        %509 = vmatprep.subr.mxu0 0.0
        %510 = vmatpush2.msra.mxu0 0.0
        %511 = vmatprep.subr.mxu0 0.0
        %512 = vmatpush2.msra.mxu0 0.0
        %513 = vmatprep.subr.mxu0 0.0
        %514 = vmatpush2.msra.mxu0 0.0
        %515 = vmatprep.subr.mxu0 0.0
        %516 = vmatpush2.msra.mxu0 0.0
        %517 = vmatprep.subr.mxu0 0.0
        %518 = vmatpush2.msra.mxu0 0.0
        %519 = vmatprep.subr.mxu0 0.0
        %520 = vmatpush2.msra.mxu0 0.0
        %521 = vmatprep.subr.mxu0 0.0
        %522 = vmatpush2.msra.mxu0 0.0
        %523 = vmatprep.subr.mxu0 0.0
        %524 = vmatpush2.msra.mxu0 0.0
        %525 = vmatprep.subr.mxu0 0.0
        %526 = vmatpush2.msra.mxu0 0.0
        %527 = vmatprep.subr.mxu0 0.0
        %528 = vmatpush2.msra.mxu0 0.0
        %529 = vmatprep.subr.mxu0 0.0
        %530 = vmatpush2.msra.mxu0 0.0
        %531 = vmatprep.subr.mxu0 0.0
        %532 = vmatpush2.msra.mxu0 0.0
        %533 = vmatprep.subr.mxu0 0.0
        %534 = vmatpush2.msra.mxu0 0.0
        %535 = vmatprep.subr.mxu0 0.0
        %536 = vmatpush2.msra.mxu0 0.0
        %537 = vmatprep.subr.mxu0 0.0
        %538 = vmatpush2.msra.mxu0 0.0
        %539 = vmatprep.subr.mxu0 0.0
        %540 = vmatpush2.msra.mxu0 0.0
        %541 = vmatprep.mubr.f32.mxu0 0.0
        %542 = vmatmul.mubr.f32.gmra.mxu0 %v335
        %v543 = vpop.f32.mrf.mxu0
        %v544 = vadd.f32 0.0, %v543
        %v545 = vpop.f32.mrf.mxu0
        %546 = vdwg.mxu0
        %547 = vmatprep.subr.mxu0 0.0
        %548 = vmatpush1.msra.mxu0 0.0
        %549 = vmatprep.subr.mxu0 0.0
        %550 = vmatpush1.msra.mxu0 0.0
        %551 = vmatprep.subr.mxu0 0.0
        %552 = vmatpush1.msra.mxu0 0.0
        %553 = vmatprep.subr.mxu0 0.0
        %554 = vmatpush1.msra.mxu0 0.0
        %555 = vmatprep.subr.mxu0 0.0
        %556 = vmatpush1.msra.mxu0 0.0
        %557 = vmatprep.subr.mxu0 0.0
        %558 = vmatpush1.msra.mxu0 0.0
        %559 = vmatprep.subr.mxu0 0.0
        %560 = vmatpush1.msra.mxu0 0.0
        %561 = vmatprep.subr.mxu0 0.0
        %562 = vmatpush1.msra.mxu0 0.0
        %563 = vmatprep.subr.mxu0 0.0
        %564 = vmatpush1.msra.mxu0 0.0
        %565 = vmatprep.subr.mxu0 0.0
        %566 = vmatpush1.msra.mxu0 0.0
        %567 = vmatprep.subr.mxu0 0.0
        %568 = vmatpush1.msra.mxu0 0.0
        %569 = vmatprep.subr.mxu0 0.0
        %570 = vmatpush1.msra.mxu0 0.0
        %571 = vmatprep.subr.mxu0 0.0
        %572 = vmatpush1.msra.mxu0 0.0
        %573 = vmatprep.subr.mxu0 0.0
        %574 = vmatpush1.msra.mxu0 0.0
        %575 = vmatprep.subr.mxu0 0.0
        %576 = vmatpush1.msra.mxu0 0.0
        %577 = vmatprep.subr.mxu0 0.0
        %578 = vmatpush1.msra.mxu0 %v324
        %579 = vmatprep.subr.mxu0 0.0
        %580 = vmatpush2.msra.mxu0 0.0
        %581 = vmatprep.subr.mxu0 0.0
        %582 = vmatpush2.msra.mxu0 0.0
        %583 = vmatprep.subr.mxu0 0.0
        %584 = vmatpush2.msra.mxu0 0.0
        %585 = vmatprep.subr.mxu0 0.0
        %586 = vmatpush2.msra.mxu0 0.0
        %587 = vmatprep.subr.mxu0 0.0
        %588 = vmatpush2.msra.mxu0 0.0
        %589 = vmatprep.subr.mxu0 0.0
        %590 = vmatpush2.msra.mxu0 0.0
        %591 = vmatprep.subr.mxu0 0.0
        %592 = vmatpush2.msra.mxu0 0.0
        %593 = vmatprep.subr.mxu0 0.0
        %594 = vmatpush2.msra.mxu0 0.0
        %595 = vmatprep.subr.mxu0 0.0
        %596 = vmatpush2.msra.mxu0 0.0
        %597 = vmatprep.subr.mxu0 0.0
        %598 = vmatpush2.msra.mxu0 0.0
        %599 = vmatprep.subr.mxu0 0.0
        %600 = vmatpush2.msra.mxu0 0.0
        %601 = vmatprep.subr.mxu0 0.0
        %602 = vmatpush2.msra.mxu0 0.0
        %603 = vmatprep.subr.mxu0 0.0
        %604 = vmatpush2.msra.mxu0 0.0
        %605 = vmatprep.subr.mxu0 0.0
        %606 = vmatpush2.msra.mxu0 0.0
        %607 = vmatprep.subr.mxu0 0.0
        %608 = vmatpush2.msra.mxu0 0.0
        %609 = vmatprep.subr.mxu0 0.0
        %610 = vmatpush2.msra.mxu0 0.0
        %611 = vmatprep.mubr.f32.mxu0 0.0
        %612 = vmatmul.mubr.f32.gmra.mxu0 %v335
        %v613 = vpop.f32.mrf.mxu0
        %v614 = vadd.f32 0.0, %v613
        %v615 = vpop.f32.mrf.mxu0
        %616 = vdwg.mxu0
        %617 = vmatprep.subr.mxu0 0.0
        %618 = vmatpush1.msra.mxu0 0.0
        %619 = vmatprep.subr.mxu0 0.0
        %620 = vmatpush1.msra.mxu0 0.0
        %621 = vmatprep.subr.mxu0 0.0
        %622 = vmatpush1.msra.mxu0 0.0
        %623 = vmatprep.subr.mxu0 0.0
        %624 = vmatpush1.msra.mxu0 0.0
        %625 = vmatprep.subr.mxu0 0.0
        %626 = vmatpush1.msra.mxu0 0.0
        %627 = vmatprep.subr.mxu0 0.0
        %628 = vmatpush1.msra.mxu0 0.0
        %629 = vmatprep.subr.mxu0 0.0
        %630 = vmatpush1.msra.mxu0 0.0
        %631 = vmatprep.subr.mxu0 0.0
        %632 = vmatpush1.msra.mxu0 0.0
        %633 = vmatprep.subr.mxu0 0.0
        %634 = vmatpush1.msra.mxu0 0.0
        %635 = vmatprep.subr.mxu0 0.0
        %636 = vmatpush1.msra.mxu0 0.0
        %637 = vmatprep.subr.mxu0 0.0
        %638 = vmatpush1.msra.mxu0 0.0
        %639 = vmatprep.subr.mxu0 0.0
        %640 = vmatpush1.msra.mxu0 0.0
        %641 = vmatprep.subr.mxu0 0.0
        %642 = vmatpush1.msra.mxu0 0.0
        %643 = vmatprep.subr.mxu0 0.0
        %644 = vmatpush1.msra.mxu0 0.0
        %645 = vmatprep.subr.mxu0 0.0
        %646 = vmatpush1.msra.mxu0 0.0
        %647 = vmatprep.subr.mxu0 0.0
        %648 = vmatpush1.msra.mxu0 %v325
        %649 = vmatprep.subr.mxu0 0.0
        %650 = vmatpush2.msra.mxu0 0.0
        %651 = vmatprep.subr.mxu0 0.0
        %652 = vmatpush2.msra.mxu0 0.0
        %653 = vmatprep.subr.mxu0 0.0
        %654 = vmatpush2.msra.mxu0 0.0
        %655 = vmatprep.subr.mxu0 0.0
        %656 = vmatpush2.msra.mxu0 0.0
        %657 = vmatprep.subr.mxu0 0.0
        %658 = vmatpush2.msra.mxu0 0.0
        %659 = vmatprep.subr.mxu0 0.0
        %660 = vmatpush2.msra.mxu0 0.0
        %661 = vmatprep.subr.mxu0 0.0
        %662 = vmatpush2.msra.mxu0 0.0
        %663 = vmatprep.subr.mxu0 0.0
        %664 = vmatpush2.msra.mxu0 0.0
        %665 = vmatprep.subr.mxu0 0.0
        %666 = vmatpush2.msra.mxu0 0.0
        %667 = vmatprep.subr.mxu0 0.0
        %668 = vmatpush2.msra.mxu0 0.0
        %669 = vmatprep.subr.mxu0 0.0
        %670 = vmatpush2.msra.mxu0 0.0
        %671 = vmatprep.subr.mxu0 0.0
        %672 = vmatpush2.msra.mxu0 0.0
        %673 = vmatprep.subr.mxu0 0.0
        %674 = vmatpush2.msra.mxu0 0.0
        %675 = vmatprep.subr.mxu0 0.0
        %676 = vmatpush2.msra.mxu0 0.0
        %677 = vmatprep.subr.mxu0 0.0
        %678 = vmatpush2.msra.mxu0 0.0
        %679 = vmatprep.subr.mxu0 0.0
        %680 = vmatpush2.msra.mxu0 0.0
        %681 = vmatprep.mubr.f32.mxu0 0.0
        %682 = vmatmul.mubr.f32.gmra.mxu0 %v335
        %v683 = vpop.f32.mrf.mxu0
        %v684 = vadd.f32 0.0, %v683
        %v685 = vpop.f32.mrf.mxu0
        %686 = vdwg.mxu0
        %687 = vmatprep.subr.mxu0 0.0
        %688 = vmatpush1.msra.mxu0 0.0
        %689 = vmatprep.subr.mxu0 0.0
        %690 = vmatpush1.msra.mxu0 0.0
        %691 = vmatprep.subr.mxu0 0.0
        %692 = vmatpush1.msra.mxu0 0.0
        %693 = vmatprep.subr.mxu0 0.0
        %694 = vmatpush1.msra.mxu0 0.0
        %695 = vmatprep.subr.mxu0 0.0
        %696 = vmatpush1.msra.mxu0 0.0
        %697 = vmatprep.subr.mxu0 0.0
        %698 = vmatpush1.msra.mxu0 0.0
        %699 = vmatprep.subr.mxu0 0.0
        %700 = vmatpush1.msra.mxu0 0.0
        %701 = vmatprep.subr.mxu0 0.0
        %702 = vmatpush1.msra.mxu0 0.0
        %703 = vmatprep.subr.mxu0 0.0
        %704 = vmatpush1.msra.mxu0 0.0
        %705 = vmatprep.subr.mxu0 0.0
        %706 = vmatpush1.msra.mxu0 0.0
        %707 = vmatprep.subr.mxu0 0.0
        %708 = vmatpush1.msra.mxu0 0.0
        %709 = vmatprep.subr.mxu0 0.0
        %710 = vmatpush1.msra.mxu0 0.0
        %711 = vmatprep.subr.mxu0 0.0
        %712 = vmatpush1.msra.mxu0 0.0
        %713 = vmatprep.subr.mxu0 0.0
        %714 = vmatpush1.msra.mxu0 0.0
        %715 = vmatprep.subr.mxu0 0.0
        %716 = vmatpush1.msra.mxu0 0.0
        %717 = vmatprep.subr.mxu0 0.0
        %718 = vmatpush1.msra.mxu0 %v326
        %719 = vmatprep.subr.mxu0 0.0
        %720 = vmatpush2.msra.mxu0 0.0
        %721 = vmatprep.subr.mxu0 0.0
        %722 = vmatpush2.msra.mxu0 0.0
        %723 = vmatprep.subr.mxu0 0.0
        %724 = vmatpush2.msra.mxu0 0.0
        %725 = vmatprep.subr.mxu0 0.0
        %726 = vmatpush2.msra.mxu0 0.0
        %727 = vmatprep.subr.mxu0 0.0
        %728 = vmatpush2.msra.mxu0 0.0
        %729 = vmatprep.subr.mxu0 0.0
        %730 = vmatpush2.msra.mxu0 0.0
        %731 = vmatprep.subr.mxu0 0.0
        %732 = vmatpush2.msra.mxu0 0.0
        %733 = vmatprep.subr.mxu0 0.0
        %734 = vmatpush2.msra.mxu0 0.0
        %735 = vmatprep.subr.mxu0 0.0
        %736 = vmatpush2.msra.mxu0 0.0
        %737 = vmatprep.subr.mxu0 0.0
        %738 = vmatpush2.msra.mxu0 0.0
        %739 = vmatprep.subr.mxu0 0.0
        %740 = vmatpush2.msra.mxu0 0.0
        %741 = vmatprep.subr.mxu0 0.0
        %742 = vmatpush2.msra.mxu0 0.0
        %743 = vmatprep.subr.mxu0 0.0
        %744 = vmatpush2.msra.mxu0 0.0
        %745 = vmatprep.subr.mxu0 0.0
        %746 = vmatpush2.msra.mxu0 0.0
        %747 = vmatprep.subr.mxu0 0.0
        %748 = vmatpush2.msra.mxu0 0.0
        %749 = vmatprep.subr.mxu0 0.0
        %750 = vmatpush2.msra.mxu0 0.0
        %751 = vmatprep.mubr.f32.mxu0 0.0
        %752 = vmatmul.mubr.f32.gmra.mxu0 %v335
        %v753 = vpop.f32.mrf.mxu0
        %v754 = vadd.f32 0.0, %v753
        %v755 = vpop.f32.mrf.mxu0
        %756 = vdwg.mxu0
        %757 = vmatprep.subr.mxu0 0.0
        %758 = vmatpush1.msra.mxu0 0.0
        %759 = vmatprep.subr.mxu0 0.0
        %760 = vmatpush1.msra.mxu0 0.0
        %761 = vmatprep.subr.mxu0 0.0
        %762 = vmatpush1.msra.mxu0 0.0
        %763 = vmatprep.subr.mxu0 0.0
        %764 = vmatpush1.msra.mxu0 0.0
        %765 = vmatprep.subr.mxu0 0.0
        %766 = vmatpush1.msra.mxu0 0.0
        %767 = vmatprep.subr.mxu0 0.0
        %768 = vmatpush1.msra.mxu0 0.0
        %769 = vmatprep.subr.mxu0 0.0
        %770 = vmatpush1.msra.mxu0 0.0
        %771 = vmatprep.subr.mxu0 0.0
        %772 = vmatpush1.msra.mxu0 0.0
        %773 = vmatprep.subr.mxu0 0.0
        %774 = vmatpush1.msra.mxu0 0.0
        %775 = vmatprep.subr.mxu0 0.0
        %776 = vmatpush1.msra.mxu0 0.0
        %777 = vmatprep.subr.mxu0 0.0
        %778 = vmatpush1.msra.mxu0 0.0
        %779 = vmatprep.subr.mxu0 0.0
        %780 = vmatpush1.msra.mxu0 0.0
        %781 = vmatprep.subr.mxu0 0.0
        %782 = vmatpush1.msra.mxu0 0.0
        %783 = vmatprep.subr.mxu0 0.0
        %784 = vmatpush1.msra.mxu0 0.0
        %785 = vmatprep.subr.mxu0 0.0
        %786 = vmatpush1.msra.mxu0 0.0
        %787 = vmatprep.subr.mxu0 0.0
        %788 = vmatpush1.msra.mxu0 %v327
        %789 = vmatprep.subr.mxu0 0.0
        %790 = vmatpush2.msra.mxu0 0.0
        %791 = vmatprep.subr.mxu0 0.0
        %792 = vmatpush2.msra.mxu0 0.0
        %793 = vmatprep.subr.mxu0 0.0
        %794 = vmatpush2.msra.mxu0 0.0
        %795 = vmatprep.subr.mxu0 0.0
        %796 = vmatpush2.msra.mxu0 0.0
        %797 = vmatprep.subr.mxu0 0.0
        %798 = vmatpush2.msra.mxu0 0.0
        %799 = vmatprep.subr.mxu0 0.0
        %800 = vmatpush2.msra.mxu0 0.0
        %801 = vmatprep.subr.mxu0 0.0
        %802 = vmatpush2.msra.mxu0 0.0
        %803 = vmatprep.subr.mxu0 0.0
        %804 = vmatpush2.msra.mxu0 0.0
        %805 = vmatprep.subr.mxu0 0.0
        %806 = vmatpush2.msra.mxu0 0.0
        %807 = vmatprep.subr.mxu0 0.0
        %808 = vmatpush2.msra.mxu0 0.0
        %809 = vmatprep.subr.mxu0 0.0
        %810 = vmatpush2.msra.mxu0 0.0
        %811 = vmatprep.subr.mxu0 0.0
        %812 = vmatpush2.msra.mxu0 0.0
        %813 = vmatprep.subr.mxu0 0.0
        %814 = vmatpush2.msra.mxu0 0.0
        %815 = vmatprep.subr.mxu0 0.0
        %816 = vmatpush2.msra.mxu0 0.0
        %817 = vmatprep.subr.mxu0 0.0
        %818 = vmatpush2.msra.mxu0 0.0
        %819 = vmatprep.subr.mxu0 0.0
        %820 = vmatpush2.msra.mxu0 0.0
        %821 = vmatprep.mubr.f32.mxu0 0.0
        %822 = vmatmul.mubr.f32.gmra.mxu0 %v335
        %v823 = vpop.f32.mrf.mxu0
        %v824 = vadd.f32 0.0, %v823
        %v825 = vpop.f32.mrf.mxu0
        %826 = vdwg.mxu0
        %827 = vmatprep.subr.mxu0 0.0
        %828 = vmatpush1.msra.mxu0 0.0
        %829 = vmatprep.subr.mxu0 0.0
        %830 = vmatpush1.msra.mxu0 0.0
        %831 = vmatprep.subr.mxu0 0.0
        %832 = vmatpush1.msra.mxu0 0.0
        %833 = vmatprep.subr.mxu0 0.0
        %834 = vmatpush1.msra.mxu0 0.0
        %835 = vmatprep.subr.mxu0 0.0
        %836 = vmatpush1.msra.mxu0 0.0
        %837 = vmatprep.subr.mxu0 0.0
        %838 = vmatpush1.msra.mxu0 0.0
        %839 = vmatprep.subr.mxu0 0.0
        %840 = vmatpush1.msra.mxu0 0.0
        %841 = vmatprep.subr.mxu0 0.0
        %842 = vmatpush1.msra.mxu0 0.0
        %843 = vmatprep.subr.mxu0 0.0
        %844 = vmatpush1.msra.mxu0 0.0
        %845 = vmatprep.subr.mxu0 0.0
        %846 = vmatpush1.msra.mxu0 0.0
        %847 = vmatprep.subr.mxu0 0.0
        %848 = vmatpush1.msra.mxu0 0.0
        %849 = vmatprep.subr.mxu0 0.0
        %850 = vmatpush1.msra.mxu0 0.0
        %851 = vmatprep.subr.mxu0 0.0
        %852 = vmatpush1.msra.mxu0 0.0
        %853 = vmatprep.subr.mxu0 0.0
        %854 = vmatpush1.msra.mxu0 0.0
        %855 = vmatprep.subr.mxu0 0.0
        %856 = vmatpush1.msra.mxu0 0.0
        %857 = vmatprep.subr.mxu0 0.0
        %858 = vmatpush1.msra.mxu0 %v328
        %859 = vmatprep.subr.mxu0 0.0
        %860 = vmatpush2.msra.mxu0 0.0
        %861 = vmatprep.subr.mxu0 0.0
        %862 = vmatpush2.msra.mxu0 0.0
        %863 = vmatprep.subr.mxu0 0.0
        %864 = vmatpush2.msra.mxu0 0.0
        %865 = vmatprep.subr.mxu0 0.0
        %866 = vmatpush2.msra.mxu0 0.0
        %867 = vmatprep.subr.mxu0 0.0
        %868 = vmatpush2.msra.mxu0 0.0
        %869 = vmatprep.subr.mxu0 0.0
        %870 = vmatpush2.msra.mxu0 0.0
        %871 = vmatprep.subr.mxu0 0.0
        %872 = vmatpush2.msra.mxu0 0.0
        %873 = vmatprep.subr.mxu0 0.0
        %874 = vmatpush2.msra.mxu0 0.0
        %875 = vmatprep.subr.mxu0 0.0
        %876 = vmatpush2.msra.mxu0 0.0
        %877 = vmatprep.subr.mxu0 0.0
        %878 = vmatpush2.msra.mxu0 0.0
        %879 = vmatprep.subr.mxu0 0.0
        %880 = vmatpush2.msra.mxu0 0.0
        %881 = vmatprep.subr.mxu0 0.0
        %882 = vmatpush2.msra.mxu0 0.0
        %883 = vmatprep.subr.mxu0 0.0
        %884 = vmatpush2.msra.mxu0 0.0
        %885 = vmatprep.subr.mxu0 0.0
        %886 = vmatpush2.msra.mxu0 0.0
        %887 = vmatprep.subr.mxu0 0.0
        %888 = vmatpush2.msra.mxu0 0.0
        %889 = vmatprep.subr.mxu0 0.0
        %890 = vmatpush2.msra.mxu0 0.0
        %891 = vmatprep.mubr.f32.mxu0 0.0
        %892 = vmatmul.mubr.f32.gmra.mxu0 %v335
        %v893 = vpop.f32.mrf.mxu0
        %v894 = vadd.f32 0.0, %v893
        %v895 = vpop.f32.mrf.mxu0
        %896 = vdwg.mxu0
        %v897 = vcombine.low %v404, %v544
        %v899 = vunpack.c.l.s4 1983009808
        %v900 = vunpack.c.0.s8 %v899
        %v901 = vlaneseq
        %v902 = vshrl.u32 %v901, 7
        %v903 = vsub.s32 %v900, %v902
        %v904 = vrot.slane %v897, %v903
        %v905 = vcombine.low %v474, %v614
        %v907 = vunpack.c.l.s4 1983009808
        %v908 = vunpack.c.0.s8 %v907
        %v909 = vlaneseq
        %v910 = vshrl.u32 %v909, 7
        %v911 = vsub.s32 %v908, %v910
        %v912 = vrot.slane %v905, %v911
        %v913 = vcombine.low %v684, %v824
        %v915 = vunpack.c.l.s4 1983009808
        %v916 = vunpack.c.0.s8 %v915
        %v917 = vlaneseq
        %v918 = vshrl.u32 %v917, 7
        %v919 = vsub.s32 %v916, %v918
        %v920 = vrot.slane %v913, %v919
        %v921 = vcombine.low %v754, %v894
        %v923 = vunpack.c.l.s4 1983009808
        %v924 = vunpack.c.0.s8 %v923
        %v925 = vlaneseq
        %v926 = vshrl.u32 %v925, 7
        %v927 = vsub.s32 %v924, %v926
        %v928 = vrot.slane %v921, %v927
        %v929 = vcombine.low %v904, %v912
        %v930 = vcombine.high %v904, %v912
        %v932 = vunpack.c.l.s4 1934713408
        %v933 = vunpack.c.0.s8 %v932
        %v934 = vlaneseq
        %v935 = vshrl.u32 %v934, 7
        %v936 = vsub.s32 %v933, %v935
        %v937 = vrot.slane %v929, %v936
        %v939 = vunpack.c.l.s4 1934713408
        %v940 = vunpack.c.0.s8 %v939
        %v941 = vlaneseq
        %v942 = vshrl.u32 %v941, 7
        %v943 = vsub.s32 %v940, %v942
        %v944 = vrot.slane %v930, %v943
        %v945 = vcombine.low %v920, %v928
        %v946 = vcombine.high %v920, %v928
        %v948 = vunpack.c.l.s4 1934713408
        %v949 = vunpack.c.0.s8 %v948
        %v950 = vlaneseq
        %v951 = vshrl.u32 %v950, 7
        %v952 = vsub.s32 %v949, %v951
        %v953 = vrot.slane %v945, %v952
        %v955 = vunpack.c.l.s4 1934713408
        %v956 = vunpack.c.0.s8 %v955
        %v957 = vlaneseq
        %v958 = vshrl.u32 %v957, 7
        %v959 = vsub.s32 %v956, %v958
        %v960 = vrot.slane %v946, %v959
        %v961 = vcombine.low %v937, %v953
        %v962 = vcombine.high %v937, %v953
        %v963 = vcombine.low %v944, %v960
        %v964 = vcombine.high %v944, %v960
        %v966 = vsel %vm333, %v961, 0
        %968 = vmatprep.subr.mxu0 0.0
        %969 = vmatpush1.msra.mxu0 0.0
        %970 = vmatprep.subr.mxu0 0.0
        %971 = vmatpush1.msra.mxu0 0.0
        %972 = vmatprep.subr.mxu0 0.0
        %973 = vmatpush1.msra.mxu0 0.0
        %974 = vmatprep.subr.mxu0 0.0
        %975 = vmatpush1.msra.mxu0 0.0
        %976 = vmatprep.subr.mxu0 0.0
        %977 = vmatpush1.msra.mxu0 0.0
        %978 = vmatprep.subr.mxu0 0.0
        %979 = vmatpush1.msra.mxu0 0.0
        %980 = vmatprep.subr.mxu0 0.0
        %981 = vmatpush1.msra.mxu0 0.0
        %982 = vmatprep.subr.mxu0 0.0
        %983 = vmatpush1.msra.mxu0 0.0
        %984 = vmatprep.subr.mxu0 0.0
        %985 = vmatpush1.msra.mxu0 0.0
        %986 = vmatprep.subr.mxu0 0.0
        %987 = vmatpush1.msra.mxu0 0.0
        %988 = vmatprep.subr.mxu0 0.0
        %989 = vmatpush1.msra.mxu0 0.0
        %990 = vmatprep.subr.mxu0 0.0
        %991 = vmatpush1.msra.mxu0 0.0
        %992 = vmatprep.subr.mxu0 0.0
        %993 = vmatpush1.msra.mxu0 0.0
        %994 = vmatprep.subr.mxu0 0.0
        %995 = vmatpush1.msra.mxu0 0.0
        %996 = vmatprep.subr.mxu0 0.0
        %997 = vmatpush1.msra.mxu0 0.0
        %998 = vmatprep.subr.mxu0 0.0
        %999 = vmatpush1.msra.mxu0 %v330
        %1000 = vmatprep.subr.mxu0 0.0
        %1001 = vmatpush2.msra.mxu0 0.0
        %1002 = vmatprep.subr.mxu0 0.0
        %1003 = vmatpush2.msra.mxu0 0.0
        %1004 = vmatprep.subr.mxu0 0.0
        %1005 = vmatpush2.msra.mxu0 0.0
        %1006 = vmatprep.subr.mxu0 0.0
        %1007 = vmatpush2.msra.mxu0 0.0
        %1008 = vmatprep.subr.mxu0 0.0
        %1009 = vmatpush2.msra.mxu0 0.0
        %1010 = vmatprep.subr.mxu0 0.0
        %1011 = vmatpush2.msra.mxu0 0.0
        %1012 = vmatprep.subr.mxu0 0.0
        %1013 = vmatpush2.msra.mxu0 0.0
        %1014 = vmatprep.subr.mxu0 0.0
        %1015 = vmatpush2.msra.mxu0 0.0
        %1016 = vmatprep.subr.mxu0 0.0
        %1017 = vmatpush2.msra.mxu0 0.0
        %1018 = vmatprep.subr.mxu0 0.0
        %1019 = vmatpush2.msra.mxu0 0.0
        %1020 = vmatprep.subr.mxu0 0.0
        %1021 = vmatpush2.msra.mxu0 0.0
        %1022 = vmatprep.subr.mxu0 0.0
        %1023 = vmatpush2.msra.mxu0 0.0
        %1024 = vmatprep.subr.mxu0 0.0
        %1025 = vmatpush2.msra.mxu0 0.0
        %1026 = vmatprep.subr.mxu0 0.0
        %1027 = vmatpush2.msra.mxu0 0.0
        %1028 = vmatprep.subr.mxu0 0.0
        %1029 = vmatpush2.msra.mxu0 0.0
        %1030 = vmatprep.subr.mxu0 0.0
        %1031 = vmatpush2.msra.mxu0 0.0
        %1032 = vmatprep.mubr.f32.mxu0 0.0
        %1033 = vmatmul.mubr.f32.gmra.mxu0 %v966
        %v1034 = vpop.f32.mrf.mxu0
        %v1035 = vadd.f32 0.0, %v1034
        %v1036 = vpop.f32.mrf.mxu0
        %1037 = vdwg.mxu0
        %v1039 = vsel %vm333, %v962, 0
        %1041 = vmatprep.subr.mxu0 0.0
        %1042 = vmatpush1.msra.mxu0 0.0
        %1043 = vmatprep.subr.mxu0 0.0
        %1044 = vmatpush1.msra.mxu0 0.0
        %1045 = vmatprep.subr.mxu0 0.0
        %1046 = vmatpush1.msra.mxu0 0.0
        %1047 = vmatprep.subr.mxu0 0.0
        %1048 = vmatpush1.msra.mxu0 0.0
        %1049 = vmatprep.subr.mxu0 0.0
        %1050 = vmatpush1.msra.mxu0 0.0
        %1051 = vmatprep.subr.mxu0 0.0
        %1052 = vmatpush1.msra.mxu0 0.0
        %1053 = vmatprep.subr.mxu0 0.0
        %1054 = vmatpush1.msra.mxu0 0.0
        %1055 = vmatprep.subr.mxu0 0.0
        %1056 = vmatpush1.msra.mxu0 0.0
        %1057 = vmatprep.subr.mxu0 0.0
        %1058 = vmatpush1.msra.mxu0 0.0
        %1059 = vmatprep.subr.mxu0 0.0
        %1060 = vmatpush1.msra.mxu0 0.0
        %1061 = vmatprep.subr.mxu0 0.0
        %1062 = vmatpush1.msra.mxu0 0.0
        %1063 = vmatprep.subr.mxu0 0.0
        %1064 = vmatpush1.msra.mxu0 0.0
        %1065 = vmatprep.subr.mxu0 0.0
        %1066 = vmatpush1.msra.mxu0 0.0
        %1067 = vmatprep.subr.mxu0 0.0
        %1068 = vmatpush1.msra.mxu0 0.0
        %1069 = vmatprep.subr.mxu0 0.0
        %1070 = vmatpush1.msra.mxu0 0.0
        %1071 = vmatprep.subr.mxu0 0.0
        %1072 = vmatpush1.msra.mxu0 %v330
        %1073 = vmatprep.subr.mxu0 0.0
        %1074 = vmatpush2.msra.mxu0 0.0
        %1075 = vmatprep.subr.mxu0 0.0
        %1076 = vmatpush2.msra.mxu0 0.0
        %1077 = vmatprep.subr.mxu0 0.0
        %1078 = vmatpush2.msra.mxu0 0.0
        %1079 = vmatprep.subr.mxu0 0.0
        %1080 = vmatpush2.msra.mxu0 0.0
        %1081 = vmatprep.subr.mxu0 0.0
        %1082 = vmatpush2.msra.mxu0 0.0
        %1083 = vmatprep.subr.mxu0 0.0
        %1084 = vmatpush2.msra.mxu0 0.0
        %1085 = vmatprep.subr.mxu0 0.0
        %1086 = vmatpush2.msra.mxu0 0.0
        %1087 = vmatprep.subr.mxu0 0.0
        %1088 = vmatpush2.msra.mxu0 0.0
        %1089 = vmatprep.subr.mxu0 0.0
        %1090 = vmatpush2.msra.mxu0 0.0
        %1091 = vmatprep.subr.mxu0 0.0
        %1092 = vmatpush2.msra.mxu0 0.0
        %1093 = vmatprep.subr.mxu0 0.0
        %1094 = vmatpush2.msra.mxu0 0.0
        %1095 = vmatprep.subr.mxu0 0.0
        %1096 = vmatpush2.msra.mxu0 0.0
        %1097 = vmatprep.subr.mxu0 0.0
        %1098 = vmatpush2.msra.mxu0 0.0
        %1099 = vmatprep.subr.mxu0 0.0
        %1100 = vmatpush2.msra.mxu0 0.0
        %1101 = vmatprep.subr.mxu0 0.0
        %1102 = vmatpush2.msra.mxu0 0.0
        %1103 = vmatprep.subr.mxu0 0.0
        %1104 = vmatpush2.msra.mxu0 0.0
        %1105 = vmatprep.mubr.f32.mxu0 0.0
        %1106 = vmatmul.mubr.f32.gmra.mxu0 %v1039
        %v1107 = vpop.f32.mrf.mxu0
        %v1108 = vadd.f32 0.0, %v1107
        %v1109 = vpop.f32.mrf.mxu0
        %1110 = vdwg.mxu0
        %v1112 = vsel %vm333, %v963, 0
        %1114 = vmatprep.subr.mxu0 0.0
        %1115 = vmatpush1.msra.mxu0 0.0
        %1116 = vmatprep.subr.mxu0 0.0
        %1117 = vmatpush1.msra.mxu0 0.0
        %1118 = vmatprep.subr.mxu0 0.0
        %1119 = vmatpush1.msra.mxu0 0.0
        %1120 = vmatprep.subr.mxu0 0.0
        %1121 = vmatpush1.msra.mxu0 0.0
        %1122 = vmatprep.subr.mxu0 0.0
        %1123 = vmatpush1.msra.mxu0 0.0
        %1124 = vmatprep.subr.mxu0 0.0
        %1125 = vmatpush1.msra.mxu0 0.0
        %1126 = vmatprep.subr.mxu0 0.0
        %1127 = vmatpush1.msra.mxu0 0.0
        %1128 = vmatprep.subr.mxu0 0.0
        %1129 = vmatpush1.msra.mxu0 0.0
        %1130 = vmatprep.subr.mxu0 0.0
        %1131 = vmatpush1.msra.mxu0 0.0
        %1132 = vmatprep.subr.mxu0 0.0
        %1133 = vmatpush1.msra.mxu0 0.0
        %1134 = vmatprep.subr.mxu0 0.0
        %1135 = vmatpush1.msra.mxu0 0.0
        %1136 = vmatprep.subr.mxu0 0.0
        %1137 = vmatpush1.msra.mxu0 0.0
        %1138 = vmatprep.subr.mxu0 0.0
        %1139 = vmatpush1.msra.mxu0 0.0
        %1140 = vmatprep.subr.mxu0 0.0
        %1141 = vmatpush1.msra.mxu0 0.0
        %1142 = vmatprep.subr.mxu0 0.0
        %1143 = vmatpush1.msra.mxu0 0.0
        %1144 = vmatprep.subr.mxu0 0.0
        %1145 = vmatpush1.msra.mxu0 %v330
        %1146 = vmatprep.subr.mxu0 0.0
        %1147 = vmatpush2.msra.mxu0 0.0
        %1148 = vmatprep.subr.mxu0 0.0
        %1149 = vmatpush2.msra.mxu0 0.0
        %1150 = vmatprep.subr.mxu0 0.0
        %1151 = vmatpush2.msra.mxu0 0.0
        %1152 = vmatprep.subr.mxu0 0.0
        %1153 = vmatpush2.msra.mxu0 0.0
        %1154 = vmatprep.subr.mxu0 0.0
        %1155 = vmatpush2.msra.mxu0 0.0
        %1156 = vmatprep.subr.mxu0 0.0
        %1157 = vmatpush2.msra.mxu0 0.0
        %1158 = vmatprep.subr.mxu0 0.0
        %1159 = vmatpush2.msra.mxu0 0.0
        %1160 = vmatprep.subr.mxu0 0.0
        %1161 = vmatpush2.msra.mxu0 0.0
        %1162 = vmatprep.subr.mxu0 0.0
        %1163 = vmatpush2.msra.mxu0 0.0
        %1164 = vmatprep.subr.mxu0 0.0
        %1165 = vmatpush2.msra.mxu0 0.0
        %1166 = vmatprep.subr.mxu0 0.0
        %1167 = vmatpush2.msra.mxu0 0.0
        %1168 = vmatprep.subr.mxu0 0.0
        %1169 = vmatpush2.msra.mxu0 0.0
        %1170 = vmatprep.subr.mxu0 0.0
        %1171 = vmatpush2.msra.mxu0 0.0
        %1172 = vmatprep.subr.mxu0 0.0
        %1173 = vmatpush2.msra.mxu0 0.0
        %1174 = vmatprep.subr.mxu0 0.0
        %1175 = vmatpush2.msra.mxu0 0.0
        %1176 = vmatprep.subr.mxu0 0.0
        %1177 = vmatpush2.msra.mxu0 0.0
        %1178 = vmatprep.mubr.f32.mxu0 0.0
        %1179 = vmatmul.mubr.f32.gmra.mxu0 %v1112
        %v1180 = vpop.f32.mrf.mxu0
        %v1181 = vadd.f32 0.0, %v1180
        %v1182 = vpop.f32.mrf.mxu0
        %1183 = vdwg.mxu0
        %v1185 = vsel %vm333, %v964, 0
        %1187 = vmatprep.subr.mxu0 0.0
        %1188 = vmatpush1.msra.mxu0 0.0
        %1189 = vmatprep.subr.mxu0 0.0
        %1190 = vmatpush1.msra.mxu0 0.0
        %1191 = vmatprep.subr.mxu0 0.0
        %1192 = vmatpush1.msra.mxu0 0.0
        %1193 = vmatprep.subr.mxu0 0.0
        %1194 = vmatpush1.msra.mxu0 0.0
        %1195 = vmatprep.subr.mxu0 0.0
        %1196 = vmatpush1.msra.mxu0 0.0
        %1197 = vmatprep.subr.mxu0 0.0
        %1198 = vmatpush1.msra.mxu0 0.0
        %1199 = vmatprep.subr.mxu0 0.0
        %1200 = vmatpush1.msra.mxu0 0.0
        %1201 = vmatprep.subr.mxu0 0.0
        %1202 = vmatpush1.msra.mxu0 0.0
        %1203 = vmatprep.subr.mxu0 0.0
        %1204 = vmatpush1.msra.mxu0 0.0
        %1205 = vmatprep.subr.mxu0 0.0
        %1206 = vmatpush1.msra.mxu0 0.0
        %1207 = vmatprep.subr.mxu0 0.0
        %1208 = vmatpush1.msra.mxu0 0.0
        %1209 = vmatprep.subr.mxu0 0.0
        %1210 = vmatpush1.msra.mxu0 0.0
        %1211 = vmatprep.subr.mxu0 0.0
        %1212 = vmatpush1.msra.mxu0 0.0
        %1213 = vmatprep.subr.mxu0 0.0
        %1214 = vmatpush1.msra.mxu0 0.0
        %1215 = vmatprep.subr.mxu0 0.0
        %1216 = vmatpush1.msra.mxu0 0.0
        %1217 = vmatprep.subr.mxu0 0.0
        %1218 = vmatpush1.msra.mxu0 %v330
        %1219 = vmatprep.subr.mxu0 0.0
        %1220 = vmatpush2.msra.mxu0 0.0
        %1221 = vmatprep.subr.mxu0 0.0
        %1222 = vmatpush2.msra.mxu0 0.0
        %1223 = vmatprep.subr.mxu0 0.0
        %1224 = vmatpush2.msra.mxu0 0.0
        %1225 = vmatprep.subr.mxu0 0.0
        %1226 = vmatpush2.msra.mxu0 0.0
        %1227 = vmatprep.subr.mxu0 0.0
        %1228 = vmatpush2.msra.mxu0 0.0
        %1229 = vmatprep.subr.mxu0 0.0
        %1230 = vmatpush2.msra.mxu0 0.0
        %1231 = vmatprep.subr.mxu0 0.0
        %1232 = vmatpush2.msra.mxu0 0.0
        %1233 = vmatprep.subr.mxu0 0.0
        %1234 = vmatpush2.msra.mxu0 0.0
        %1235 = vmatprep.subr.mxu0 0.0
        %1236 = vmatpush2.msra.mxu0 0.0
        %1237 = vmatprep.subr.mxu0 0.0
        %1238 = vmatpush2.msra.mxu0 0.0
        %1239 = vmatprep.subr.mxu0 0.0
        %1240 = vmatpush2.msra.mxu0 0.0
        %1241 = vmatprep.subr.mxu0 0.0
        %1242 = vmatpush2.msra.mxu0 0.0
        %1243 = vmatprep.subr.mxu0 0.0
        %1244 = vmatpush2.msra.mxu0 0.0
        %1245 = vmatprep.subr.mxu0 0.0
        %1246 = vmatpush2.msra.mxu0 0.0
        %1247 = vmatprep.subr.mxu0 0.0
        %1248 = vmatpush2.msra.mxu0 0.0
        %1249 = vmatprep.subr.mxu0 0.0
        %1250 = vmatpush2.msra.mxu0 0.0
        %1251 = vmatprep.mubr.f32.mxu0 0.0
        %1252 = vmatmul.mubr.f32.gmra.mxu0 %v1185
        %v1253 = vpop.f32.mrf.mxu0
        %v1254 = vadd.f32 0.0, %v1253
        %v1255 = vpop.f32.mrf.mxu0
        %1256 = vdwg.mxu0
        %v1257 = vld [vmem:[%s279] sm:$0xff]
        %v1258 = vld [vmem:[%s279 + $0x8] sm:$0xff]
        %v1259 = vld [vmem:[%s279 + $0x10] sm:$0xff]
        %v1260 = vld [vmem:[%s279 + $0x18] sm:$0xff]
        %v1261 = vld [vmem:[%s279 + $0x20] sm:$0xff]
        %v1262 = vld [vmem:[%s279 + $0x28] sm:$0xff]
        %v1263 = vld [vmem:[%s279 + $0x30] sm:$0xff]
        %v1264 = vld [vmem:[%s279 + $0x38] sm:$0xff]
        %v1266 = vsel %vm333, %v331, 0
        %v1269 = vsel %vm333, %v332, 0
        %1271 = vmatprep.subr.mxu0 0.0
        %1272 = vmatpush1.msra.mxu0 0.0
        %1273 = vmatprep.subr.mxu0 0.0
        %1274 = vmatpush1.msra.mxu0 0.0
        %1275 = vmatprep.subr.mxu0 0.0
        %1276 = vmatpush1.msra.mxu0 0.0
        %1277 = vmatprep.subr.mxu0 0.0
        %1278 = vmatpush1.msra.mxu0 0.0
        %1279 = vmatprep.subr.mxu0 0.0
        %1280 = vmatpush1.msra.mxu0 0.0
        %1281 = vmatprep.subr.mxu0 0.0
        %1282 = vmatpush1.msra.mxu0 0.0
        %1283 = vmatprep.subr.mxu0 0.0
        %1284 = vmatpush1.msra.mxu0 0.0
        %1285 = vmatprep.subr.mxu0 0.0
        %1286 = vmatpush1.msra.mxu0 0.0
        %1287 = vmatprep.subr.mxu0 0.0
        %1288 = vmatpush1.msra.mxu0 0.0
        %1289 = vmatprep.subr.mxu0 0.0
        %1290 = vmatpush1.msra.mxu0 0.0
        %1291 = vmatprep.subr.mxu0 0.0
        %1292 = vmatpush1.msra.mxu0 0.0
        %1293 = vmatprep.subr.mxu0 0.0
        %1294 = vmatpush1.msra.mxu0 0.0
        %1295 = vmatprep.subr.mxu0 0.0
        %1296 = vmatpush1.msra.mxu0 0.0
        %1297 = vmatprep.subr.mxu0 0.0
        %1298 = vmatpush1.msra.mxu0 0.0
        %1299 = vmatprep.subr.mxu0 0.0
        %1300 = vmatpush1.msra.mxu0 0.0
        %1301 = vmatprep.subr.mxu0 0.0
        %1302 = vmatpush1.msra.mxu0 %v1035
        %1303 = vmatprep.subr.mxu0 0.0
        %1304 = vmatpush2.msra.mxu0 0.0
        %1305 = vmatprep.subr.mxu0 0.0
        %1306 = vmatpush2.msra.mxu0 0.0
        %1307 = vmatprep.subr.mxu0 0.0
        %1308 = vmatpush2.msra.mxu0 0.0
        %1309 = vmatprep.subr.mxu0 0.0
        %1310 = vmatpush2.msra.mxu0 0.0
        %1311 = vmatprep.subr.mxu0 0.0
        %1312 = vmatpush2.msra.mxu0 0.0
        %1313 = vmatprep.subr.mxu0 0.0
        %1314 = vmatpush2.msra.mxu0 0.0
        %1315 = vmatprep.subr.mxu0 0.0
        %1316 = vmatpush2.msra.mxu0 0.0
        %1317 = vmatprep.subr.mxu0 0.0
        %1318 = vmatpush2.msra.mxu0 0.0
        %1319 = vmatprep.subr.mxu0 0.0
        %1320 = vmatpush2.msra.mxu0 0.0
        %1321 = vmatprep.subr.mxu0 0.0
        %1322 = vmatpush2.msra.mxu0 0.0
        %1323 = vmatprep.subr.mxu0 0.0
        %1324 = vmatpush2.msra.mxu0 0.0
        %1325 = vmatprep.subr.mxu0 0.0
        %1326 = vmatpush2.msra.mxu0 0.0
        %1327 = vmatprep.subr.mxu0 0.0
        %1328 = vmatpush2.msra.mxu0 0.0
        %1329 = vmatprep.subr.mxu0 0.0
        %1330 = vmatpush2.msra.mxu0 0.0
        %1331 = vmatprep.subr.mxu0 0.0
        %1332 = vmatpush2.msra.mxu0 0.0
        %1333 = vmatprep.subr.mxu0 0.0
        %1334 = vmatpush2.msra.mxu0 0.0
        %1335 = vmatprep.mubr.f32.mxu0 0.0
        %1336 = vmatmul.mubr.f32.gmra.mxu0 %v1266
        %v1337 = vpop.f32.mrf.mxu0
        %v1338 = vadd.f32 %v1257, %v1337
        %v1339 = vpop.f32.mrf.mxu0
        %1340 = vmatprep.mubr.f32.mxu0 0.0
        %1341 = vmatmul.mubr.f32.gmra.mxu0 %v1269
        %v1342 = vpop.f32.mrf.mxu0
        %v1343 = vadd.f32 %v1258, %v1342
        %v1344 = vpop.f32.mrf.mxu0
        %1345 = vdwg.mxu0
        %1346 = vmatprep.subr.mxu0 0.0
        %1347 = vmatpush1.msra.mxu0 0.0
        %1348 = vmatprep.subr.mxu0 0.0
        %1349 = vmatpush1.msra.mxu0 0.0
        %1350 = vmatprep.subr.mxu0 0.0
        %1351 = vmatpush1.msra.mxu0 0.0
        %1352 = vmatprep.subr.mxu0 0.0
        %1353 = vmatpush1.msra.mxu0 0.0
        %1354 = vmatprep.subr.mxu0 0.0
        %1355 = vmatpush1.msra.mxu0 0.0
        %1356 = vmatprep.subr.mxu0 0.0
        %1357 = vmatpush1.msra.mxu0 0.0
        %1358 = vmatprep.subr.mxu0 0.0
        %1359 = vmatpush1.msra.mxu0 0.0
        %1360 = vmatprep.subr.mxu0 0.0
        %1361 = vmatpush1.msra.mxu0 0.0
        %1362 = vmatprep.subr.mxu0 0.0
        %1363 = vmatpush1.msra.mxu0 0.0
        %1364 = vmatprep.subr.mxu0 0.0
        %1365 = vmatpush1.msra.mxu0 0.0
        %1366 = vmatprep.subr.mxu0 0.0
        %1367 = vmatpush1.msra.mxu0 0.0
        %1368 = vmatprep.subr.mxu0 0.0
        %1369 = vmatpush1.msra.mxu0 0.0
        %1370 = vmatprep.subr.mxu0 0.0
        %1371 = vmatpush1.msra.mxu0 0.0
        %1372 = vmatprep.subr.mxu0 0.0
        %1373 = vmatpush1.msra.mxu0 0.0
        %1374 = vmatprep.subr.mxu0 0.0
        %1375 = vmatpush1.msra.mxu0 0.0
        %1376 = vmatprep.subr.mxu0 0.0
        %1377 = vmatpush1.msra.mxu0 %v1108
        %1378 = vmatprep.subr.mxu0 0.0
        %1379 = vmatpush2.msra.mxu0 0.0
        %1380 = vmatprep.subr.mxu0 0.0
        %1381 = vmatpush2.msra.mxu0 0.0
        %1382 = vmatprep.subr.mxu0 0.0
        %1383 = vmatpush2.msra.mxu0 0.0
        %1384 = vmatprep.subr.mxu0 0.0
        %1385 = vmatpush2.msra.mxu0 0.0
        %1386 = vmatprep.subr.mxu0 0.0
        %1387 = vmatpush2.msra.mxu0 0.0
        %1388 = vmatprep.subr.mxu0 0.0
        %1389 = vmatpush2.msra.mxu0 0.0
        %1390 = vmatprep.subr.mxu0 0.0
        %1391 = vmatpush2.msra.mxu0 0.0
        %1392 = vmatprep.subr.mxu0 0.0
        %1393 = vmatpush2.msra.mxu0 0.0
        %1394 = vmatprep.subr.mxu0 0.0
        %1395 = vmatpush2.msra.mxu0 0.0
        %1396 = vmatprep.subr.mxu0 0.0
        %1397 = vmatpush2.msra.mxu0 0.0
        %1398 = vmatprep.subr.mxu0 0.0
        %1399 = vmatpush2.msra.mxu0 0.0
        %1400 = vmatprep.subr.mxu0 0.0
        %1401 = vmatpush2.msra.mxu0 0.0
        %1402 = vmatprep.subr.mxu0 0.0
        %1403 = vmatpush2.msra.mxu0 0.0
        %1404 = vmatprep.subr.mxu0 0.0
        %1405 = vmatpush2.msra.mxu0 0.0
        %1406 = vmatprep.subr.mxu0 0.0
        %1407 = vmatpush2.msra.mxu0 0.0
        %1408 = vmatprep.subr.mxu0 0.0
        %1409 = vmatpush2.msra.mxu0 0.0
        %1410 = vmatprep.mubr.f32.mxu0 0.0
        %1411 = vmatmul.mubr.f32.gmra.mxu0 %v1266
        %v1412 = vpop.f32.mrf.mxu0
        %v1413 = vadd.f32 %v1259, %v1412
        %v1414 = vpop.f32.mrf.mxu0
        %1415 = vmatprep.mubr.f32.mxu0 0.0
        %1416 = vmatmul.mubr.f32.gmra.mxu0 %v1269
        %v1417 = vpop.f32.mrf.mxu0
        %v1418 = vadd.f32 %v1260, %v1417
        %v1419 = vpop.f32.mrf.mxu0
        %1420 = vdwg.mxu0
        %1421 = vmatprep.subr.mxu0 0.0
        %1422 = vmatpush1.msra.mxu0 0.0
        %1423 = vmatprep.subr.mxu0 0.0
        %1424 = vmatpush1.msra.mxu0 0.0
        %1425 = vmatprep.subr.mxu0 0.0
        %1426 = vmatpush1.msra.mxu0 0.0
        %1427 = vmatprep.subr.mxu0 0.0
        %1428 = vmatpush1.msra.mxu0 0.0
        %1429 = vmatprep.subr.mxu0 0.0
        %1430 = vmatpush1.msra.mxu0 0.0
        %1431 = vmatprep.subr.mxu0 0.0
        %1432 = vmatpush1.msra.mxu0 0.0
        %1433 = vmatprep.subr.mxu0 0.0
        %1434 = vmatpush1.msra.mxu0 0.0
        %1435 = vmatprep.subr.mxu0 0.0
        %1436 = vmatpush1.msra.mxu0 0.0
        %1437 = vmatprep.subr.mxu0 0.0
        %1438 = vmatpush1.msra.mxu0 0.0
        %1439 = vmatprep.subr.mxu0 0.0
        %1440 = vmatpush1.msra.mxu0 0.0
        %1441 = vmatprep.subr.mxu0 0.0
        %1442 = vmatpush1.msra.mxu0 0.0
        %1443 = vmatprep.subr.mxu0 0.0
        %1444 = vmatpush1.msra.mxu0 0.0
        %1445 = vmatprep.subr.mxu0 0.0
        %1446 = vmatpush1.msra.mxu0 0.0
        %1447 = vmatprep.subr.mxu0 0.0
        %1448 = vmatpush1.msra.mxu0 0.0
        %1449 = vmatprep.subr.mxu0 0.0
        %1450 = vmatpush1.msra.mxu0 0.0
        %1451 = vmatprep.subr.mxu0 0.0
        %1452 = vmatpush1.msra.mxu0 %v1181
        %1453 = vmatprep.subr.mxu0 0.0
        %1454 = vmatpush2.msra.mxu0 0.0
        %1455 = vmatprep.subr.mxu0 0.0
        %1456 = vmatpush2.msra.mxu0 0.0
        %1457 = vmatprep.subr.mxu0 0.0
        %1458 = vmatpush2.msra.mxu0 0.0
        %1459 = vmatprep.subr.mxu0 0.0
        %1460 = vmatpush2.msra.mxu0 0.0
        %1461 = vmatprep.subr.mxu0 0.0
        %1462 = vmatpush2.msra.mxu0 0.0
        %1463 = vmatprep.subr.mxu0 0.0
        %1464 = vmatpush2.msra.mxu0 0.0
        %1465 = vmatprep.subr.mxu0 0.0
        %1466 = vmatpush2.msra.mxu0 0.0
        %1467 = vmatprep.subr.mxu0 0.0
        %1468 = vmatpush2.msra.mxu0 0.0
        %1469 = vmatprep.subr.mxu0 0.0
        %1470 = vmatpush2.msra.mxu0 0.0
        %1471 = vmatprep.subr.mxu0 0.0
        %1472 = vmatpush2.msra.mxu0 0.0
        %1473 = vmatprep.subr.mxu0 0.0
        %1474 = vmatpush2.msra.mxu0 0.0
        %1475 = vmatprep.subr.mxu0 0.0
        %1476 = vmatpush2.msra.mxu0 0.0
        %1477 = vmatprep.subr.mxu0 0.0
        %1478 = vmatpush2.msra.mxu0 0.0
        %1479 = vmatprep.subr.mxu0 0.0
        %1480 = vmatpush2.msra.mxu0 0.0
        %1481 = vmatprep.subr.mxu0 0.0
        %1482 = vmatpush2.msra.mxu0 0.0
        %1483 = vmatprep.subr.mxu0 0.0
        %1484 = vmatpush2.msra.mxu0 0.0
        %1485 = vmatprep.mubr.f32.mxu0 0.0
        %1486 = vmatmul.mubr.f32.gmra.mxu0 %v1266
        %v1487 = vpop.f32.mrf.mxu0
        %v1488 = vadd.f32 %v1261, %v1487
        %v1489 = vpop.f32.mrf.mxu0
        %1490 = vmatprep.mubr.f32.mxu0 0.0
        %1491 = vmatmul.mubr.f32.gmra.mxu0 %v1269
        %v1492 = vpop.f32.mrf.mxu0
        %v1493 = vadd.f32 %v1262, %v1492
        %v1494 = vpop.f32.mrf.mxu0
        %1495 = vdwg.mxu0
        %1496 = vmatprep.subr.mxu0 0.0
        %1497 = vmatpush1.msra.mxu0 0.0
        %1498 = vmatprep.subr.mxu0 0.0
        %1499 = vmatpush1.msra.mxu0 0.0
        %1500 = vmatprep.subr.mxu0 0.0
        %1501 = vmatpush1.msra.mxu0 0.0
        %1502 = vmatprep.subr.mxu0 0.0
        %1503 = vmatpush1.msra.mxu0 0.0
        %1504 = vmatprep.subr.mxu0 0.0
        %1505 = vmatpush1.msra.mxu0 0.0
        %1506 = vmatprep.subr.mxu0 0.0
        %1507 = vmatpush1.msra.mxu0 0.0
        %1508 = vmatprep.subr.mxu0 0.0
        %1509 = vmatpush1.msra.mxu0 0.0
        %1510 = vmatprep.subr.mxu0 0.0
        %1511 = vmatpush1.msra.mxu0 0.0
        %1512 = vmatprep.subr.mxu0 0.0
        %1513 = vmatpush1.msra.mxu0 0.0
        %1514 = vmatprep.subr.mxu0 0.0
        %1515 = vmatpush1.msra.mxu0 0.0
        %1516 = vmatprep.subr.mxu0 0.0
        %1517 = vmatpush1.msra.mxu0 0.0
        %1518 = vmatprep.subr.mxu0 0.0
        %1519 = vmatpush1.msra.mxu0 0.0
        %1520 = vmatprep.subr.mxu0 0.0
        %1521 = vmatpush1.msra.mxu0 0.0
        %1522 = vmatprep.subr.mxu0 0.0
        %1523 = vmatpush1.msra.mxu0 0.0
        %1524 = vmatprep.subr.mxu0 0.0
        %1525 = vmatpush1.msra.mxu0 0.0
        %1526 = vmatprep.subr.mxu0 0.0
        %1527 = vmatpush1.msra.mxu0 %v1254
        %1528 = vmatprep.subr.mxu0 0.0
        %1529 = vmatpush2.msra.mxu0 0.0
        %1530 = vmatprep.subr.mxu0 0.0
        %1531 = vmatpush2.msra.mxu0 0.0
        %1532 = vmatprep.subr.mxu0 0.0
        %1533 = vmatpush2.msra.mxu0 0.0
        %1534 = vmatprep.subr.mxu0 0.0
        %1535 = vmatpush2.msra.mxu0 0.0
        %1536 = vmatprep.subr.mxu0 0.0
        %1537 = vmatpush2.msra.mxu0 0.0
        %1538 = vmatprep.subr.mxu0 0.0
        %1539 = vmatpush2.msra.mxu0 0.0
        %1540 = vmatprep.subr.mxu0 0.0
        %1541 = vmatpush2.msra.mxu0 0.0
        %1542 = vmatprep.subr.mxu0 0.0
        %1543 = vmatpush2.msra.mxu0 0.0
        %1544 = vmatprep.subr.mxu0 0.0
        %1545 = vmatpush2.msra.mxu0 0.0
        %1546 = vmatprep.subr.mxu0 0.0
        %1547 = vmatpush2.msra.mxu0 0.0
        %1548 = vmatprep.subr.mxu0 0.0
        %1549 = vmatpush2.msra.mxu0 0.0
        %1550 = vmatprep.subr.mxu0 0.0
        %1551 = vmatpush2.msra.mxu0 0.0
        %1552 = vmatprep.subr.mxu0 0.0
        %1553 = vmatpush2.msra.mxu0 0.0
        %1554 = vmatprep.subr.mxu0 0.0
        %1555 = vmatpush2.msra.mxu0 0.0
        %1556 = vmatprep.subr.mxu0 0.0
        %1557 = vmatpush2.msra.mxu0 0.0
        %1558 = vmatprep.subr.mxu0 0.0
        %1559 = vmatpush2.msra.mxu0 0.0
        %1560 = vmatprep.mubr.f32.mxu0 0.0
        %1561 = vmatmul.mubr.f32.gmra.mxu0 %v1266
        %v1562 = vpop.f32.mrf.mxu0
        %v1563 = vadd.f32 %v1263, %v1562
        %v1564 = vpop.f32.mrf.mxu0
        %1565 = vmatprep.mubr.f32.mxu0 0.0
        %1566 = vmatmul.mubr.f32.gmra.mxu0 %v1269
        %v1567 = vpop.f32.mrf.mxu0
        %v1568 = vadd.f32 %v1264, %v1567
        %v1569 = vpop.f32.mrf.mxu0
        %1570 = vdwg.mxu0
        %vm1571 = vcmask 130048
        %1572 = vst.msk [vmem:[%s314] sm:$0xff] %vm1571, %v1338
        %1573 = vst.msk [vmem:[%s314 + $0x8] sm:$0xff] %vm1571, %v1343
        %1574 = vst.msk [vmem:[%s314 + $0x10] sm:$0xff] %vm1571, %v1413
        %1575 = vst.msk [vmem:[%s314 + $0x18] sm:$0xff] %vm1571, %v1418
        %1576 = vst.msk [vmem:[%s314 + $0x20] sm:$0xff] %vm1571, %v1488
        %1577 = vst.msk [vmem:[%s314 + $0x28] sm:$0xff] %vm1571, %v1493
        %1578 = vst.msk [vmem:[%s314 + $0x30] sm:$0xff] %vm1571, %v1563
        %1579 = vst.msk [vmem:[%s314 + $0x38] sm:$0xff] %vm1571, %v1568
        %s1580 = sand.u32 %s169, 1
        %s1581 = scalar_lea.sflag [#allocation4], %s1580
        %s1582 = sand.u32 %s169, 1
        %s1583 = smul.addr %s1582, 64
        %s1584 = scalar_lea.vmem [#allocation7], %s1583
        // Predicated region
        $region49: #{tpu_custom_call.1} parent=39 // pred_check
          %p1585 = pneg %p179
        $region50: #{tpu_custom_call.1} parent=39 // pred_check_branch
          %1587 = sbr.rel (%p1585) target = $region52
        $region51: #{tpu_custom_call.1} parent=39 // pred_region
          %s1588 = smul.u32 4, %s30
          %s1590 = ssub.s32 1024, 1024
          %1591 = vsyncadd %s1581, %s1590
          %s1592 = smul.addr %s1588, 2
          %s1593 = smul.addr %s29, 8
          %s1594 = sadd.s32 %s1592, %s1593
          %s1595 = smul.addr %s1594, 128
          %s1596 = scalar_lea.hbm %s5, %s1595
          %s1597 = sshll.u32 %s1584, 4
          %s1598 = int_to_ptr.vmem [resolvable:$true] %s1597
          %1603 = dma.vmem_to_hbm [thread:$0]  %s1598, 1024, %s1596, %s1581, 128, 128, 8
        $region52: #{tpu_custom_call.1} parent=39 // pred_fallthru
          _
      $region40: #{tpu_custom_call.1} parent=5 // pred_fallthru
        _
      %p1604 = scmp.le.s32.totalorder 2, %s20
      // Predicated region
      $region53: #{tpu_custom_call.1} parent=5 // pred_check
        %p1605 = pneg %p1604
      $region54: #{tpu_custom_call.1} parent=5 // pred_check_branch
        %1607 = sbr.rel (%p1605) target = $region56
      $region55: #{tpu_custom_call.1} parent=5 // pred_region
        %s1608 = ssub.s32 %s20, 2
        // Predicated region
        $region57: #{tpu_custom_call.1} parent=55 // pred_check
          %p1609 = pneg %p185
        $region58: #{tpu_custom_call.1} parent=55 // pred_check_branch
          %1611 = sbr.rel (%p1609) target = $region60
        $region59: #{tpu_custom_call.1} parent=55 // pred_region
          %s1612 = sand.u32 %s170, 1
          %s1613 = scalar_lea.sflag [#allocation4], %s1612
          %s1614 = sand.u32 %s170, 1
          %s1615 = smul.addr %s1614, 64
          %s1616 = scalar_lea.vmem [#allocation7], %s1615
          %1617 = dma.done %s1613, 1024
        $region60: #{tpu_custom_call.1} parent=55 // pred_fallthru
          _
      $region56: #{tpu_custom_call.1} parent=5 // pred_fallthru
        _
    $region6: #{tpu_custom_call.1} parent=1 // loop_footer
      %s24 = sadd.s32 1, %s20
    $region7: #{tpu_custom_call.1} parent=1 // loop_footer_branch
      %19 = sbr.rel target = $region3
    $region8: #{tpu_custom_call.1} parent=1 // loop_exit
      _
    %1618 = vsyncpa [#allocation3], 1
    %s1619 = scalar_lea.sflag [#allocation3], 1
    %1620 = vsyncpa %s1619, 1
    %1621 = vsyncpa [#allocation6], 1
    %s1622 = scalar_lea.sflag [#allocation6], 1
    %1623 = vsyncpa %s1622, 1
    %1624 = vsyncpa [#allocation4], 1
    %s1625 = scalar_lea.sflag [#allocation4], 1
    %1626 = vsyncpa %s1625, 1

</llo_original>
